<compile_context>
chip_gen: v6e
topology: v6e:2x2x1
jax: 0.10.0
libtpu: 0.0.40
codegen_flags: <defaults>
</compile_context>

<pallas_src>
import functools

import jax
import jax.numpy as jnp
from jax import lax
from jax.experimental import pallas as pl
from jax.experimental.pallas import tpu as pltpu


def _divisors(n):
    return [d for d in range(1, n + 1) if n % d == 0]


def _pick_strip_rows(H, W, max_rows):
    """Largest TH dividing H with TH <= max_rows and a lane-legal block (TH*W % 128 == 0)."""
    cands = [d for d in _divisors(H) if d <= max_rows and (d * W) % 128 == 0]
    return max(cands) if cands else H


def _pick_halo_rows(TH, W, H):
    """Smallest halo-row block >= 2 that divides TH and is lane-legal when flattened."""
    cands = [d for d in _divisors(TH)
             if d >= 2 and ((d * W) % 128 == 0 or d * W == H * W)]
    return min(cands) if cands else TH


# Tap order matches the im2col weight layout: t = (dy+1)*3 + (dx+1) = ky*3 + kx.
_TAPS = tuple((dy, dx) for dy in (-1, 0, 1) for dx in (-1, 0, 1))


def _fused_block_kernel(x_ref, xtop_ref, xbot_ref, w1_ref, b1_ref, w2_ref, b2_ref,
                        out_ref, xs_ref, hs_ref, *, C, W, TH, HALO_ROWS):
    # x_ref    : (C, TH*W)            this strip, channels-first, spatially flattened (f32)
    # xtop_ref : (C, HALO_ROWS*W)     rows just above the strip (last 2 rows used)
    # xbot_ref : (C, HALO_ROWS*W)     rows just below the strip (first 2 rows used)
    # w*_ref   : (C, 9*C)  bf16       im2col weights, taps contiguous along K
    # b*_ref   : (C, 1)    f32
    # out_ref  : (C, TH*W) f32        output strip (also used as conv2 accumulator)
    # xs_ref   : (C, (TH+6)*W) f32    [pad row | x rows -2..TH+1 | pad row]
    # hs_ref   : (C, (TH+4)*W) f32    [pad row | h rows -1..TH   | pad row]
    s = pl.program_id(1)
    n_strips = pl.num_programs(1)
    f32 = jnp.float32

    L1 = (TH + 2) * W          # conv1 output rows -1..TH  (flattened length)
    L2 = TH * W                # conv2 / output rows 0..TH-1

    # Column-edge masks: kill the row-wrap values of the dx=-1 / dx=+1 taps (built in-kernel,
    # hidden under the matmuls).
    col = lax.broadcasted_iota(jnp.int32, (1, L1), 1) % W
    mask_l = (col != 0).astype(f32)          # zero at output column 0      (dx = -1 taps)
    mask_r = (col != (W - 1)).astype(f32)    # zero at output column W - 1  (dx = +1 taps)

    def conv3x3_into(stage_ref, w_ref, dst_ref, dst_off, L):
        # 9 accumulating per-tap matmuls: (C, C) bf16 @ (C, L) bf16 -> f32.
        # Each tap's RHS is a contiguous lane window of the row-padded staging scratch.
        # TODO(synk): on v6e/v7x pair consecutive taps (K=2C) via a (2C, L) bf16 buffer.
        for t, (dy, dx) in enumerate(_TAPS):
            off = (dy + 2) * W + dx
            win = stage_ref[:, off:off + L]                     # f32 window
            if dx == -1:
                win = win * mask_l[:, :L]                       # mask in f32 (v5e-safe)
            elif dx == 1:
                win = win * mask_r[:, :L]
            w_t = w_ref[:, t * C:(t + 1) * C]                   # (C, C) bf16
            prod = jnp.dot(w_t, win.astype(jnp.bfloat16),
                           preferred_element_type=jnp.float32)  # f32 accumulation
            if t == 0:
                dst_ref[:, dst_off:dst_off + L] = prod
            else:
                dst_ref[:, dst_off:dst_off + L] = dst_ref[:, dst_off:dst_off + L] + prod

    zrow = jnp.zeros((C, W), f32)

    # ---- stage x strip + 2-row halo into the row-padded xs scratch -------------------------
    xs_ref[:, 0:W] = zrow                                        # left pad row
    xs_ref[:, (TH + 5) * W:(TH + 6) * W] = zrow                  # right pad row

    @pl.when(s > 0)
    def _():                                                     # x rows -2, -1 (real data)
        xs_ref[:, W:3 * W] = xtop_ref[:, (HALO_ROWS - 2) * W:HALO_ROWS * W]

    @pl.when(s == 0)
    def _():                                                     # image-top zero padding
        xs_ref[:, W:3 * W] = jnp.zeros((C, 2 * W), f32)

    xs_ref[:, 3 * W:(TH + 3) * W] = x_ref[...]                   # x rows 0..TH-1

    @pl.when(s < n_strips - 1)
    def _():                                                     # x rows TH, TH+1 (real data)
        xs_ref[:, (TH + 3) * W:(TH + 5) * W] = xbot_ref[:, 0:2 * W]

    @pl.when(s == n_strips - 1)
    def _():                                                     # image-bottom zero padding
        xs_ref[:, (TH + 3) * W:(TH + 5) * W] = jnp.zeros((C, 2 * W), f32)

    # ---- conv1 (+bias, ReLU) over rows -1..TH, accumulated straight into hs ----------------
    hs_ref[:, 0:W] = zrow
    hs_ref[:, (TH + 3) * W:(TH + 4) * W] = zrow
    conv3x3_into(xs_ref, w1_ref, hs_ref, W, L1)
    hs_ref[:, W:W + L1] = jnp.maximum(hs_ref[:, W:W + L1] + b1_ref[...], 0.0)

    # conv2's zero padding at the image top / bottom: kill the out-of-image h halo rows.
    @pl.when(s == 0)
    def _():
        hs_ref[:, W:2 * W] = zrow                                # h row -1

    @pl.when(s == n_strips - 1)
    def _():
        hs_ref[:, (TH + 2) * W:(TH + 3) * W] = zrow              # h row TH

    # ---- conv2 accumulated straight into the output block, then bias + residual ------------
    conv3x3_into(hs_ref, w2_ref, out_ref, 0, L2)
    out_ref[...] = out_ref[...] + b2_ref[...] + x_ref[...]       # residual re-read from VMEM


def fast_residual_block(x_nchw, w1_oihw, b1, w2_oihw, b2, *, max_strip_rows=32):
    """Fused conv3x3 -> ReLU -> conv3x3 -> +residual (PyTorch NCHW / OIHW layouts).

    max_strip_rows controls VMEM use per step: pick it per generation (smaller on v7x's
    64 MiB/TC VMEM, larger on v5e/v6e's 128 MiB).
    """
    N, C, H, W = x_nchw.shape
    TH = _pick_strip_rows(H, W, max_strip_rows)
    HALO_ROWS = _pick_halo_rows(TH, W, H)
    assert H % TH == 0 and TH % HALO_ROWS == 0 and TH >= 2 and HALO_ROWS >= 2
    n_strips = H // TH
    RT = TH // HALO_ROWS                       # halo blocks per strip
    HB = HALO_ROWS * W                         # halo block size in flattened elements
    max_halo_blk = H // HALO_ROWS - 1          # last valid halo-block index

    x_flat = x_nchw.reshape(N, C, H * W).astype(jnp.float32)      # free reshape, no pad

    # im2col weight layout: w[co, (ky*3+kx)*C + ci] = w[co, ci, ky, kx]; bf16 MXU operands.
    w1m = jnp.transpose(w1_oihw, (0, 2, 3, 1)).reshape(C, 9 * C).astype(jnp.bfloat16)
    w2m = jnp.transpose(w2_oihw, (0, 2, 3, 1)).reshape(C, 9 * C).astype(jnp.bfloat16)
    b1c = b1.reshape(C, 1).astype(jnp.float32)
    b2c = b2.reshape(C, 1).astype(jnp.float32)

    kernel = functools.partial(_fused_block_kernel, C=C, W=W, TH=TH, HALO_ROWS=HALO_ROWS)

    out_flat = pl.pallas_call(
        kernel,
        out_shape=jax.ShapeDtypeStruct((N, C, H * W), jnp.float32),
        grid_spec=pltpu.PrefetchScalarGridSpec(
            num_scalar_prefetch=0,
            grid=(N, n_strips),
            in_specs=[
                # this strip of x
                pl.BlockSpec((None, C, TH * W), lambda n, s: (n, 0, s)),
                # rows just above the strip (clamped at the top edge; zeroed in-kernel there)
                pl.BlockSpec((None, C, HB),
                             lambda n, s: (n, 0, jnp.maximum(s * RT - 1, 0))),
                # rows just below the strip (clamped at the bottom edge; zeroed in-kernel there)
                pl.BlockSpec((None, C, HB),
                             lambda n, s: (n, 0, jnp.minimum((s + 1) * RT, max_halo_blk))),
                pl.BlockSpec((C, 9 * C), lambda n, s: (0, 0)),    # w1 (bf16)
                pl.BlockSpec((C, 1), lambda n, s: (0, 0)),        # b1
                pl.BlockSpec((C, 9 * C), lambda n, s: (0, 0)),    # w2 (bf16)
                pl.BlockSpec((C, 1), lambda n, s: (0, 0)),        # b2
            ],
            out_specs=pl.BlockSpec((None, C, TH * W), lambda n, s: (n, 0, s)),
            scratch_shapes=[
                pltpu.VMEM((C, (TH + 6) * W), jnp.float32),       # x staging: strip + halo + pad
                pltpu.VMEM((C, (TH + 4) * W), jnp.float32),       # h staging: conv1 out + pad
            ],
        ),
        # Every (image, strip) step is independent -> both axes parallel (v7x 2-TC sharding).
        compiler_params=pltpu.CompilerParams(
            dimension_semantics=("parallel", "parallel"),
            vmem_limit_bytes=48 * 1024 * 1024,                    # headroom under v7x's 64 MiB
        ),
    )(x_flat, x_flat, x_flat, w1m, b1c, w2m, b2c)

    return out_flat.reshape(N, C, H, W)


def _reference(x_nchw, w1, b1, w2, b2):
    """Pure-JAX reference (same semantics as the PyTorch module), NCHW/OIHW, f32 HIGHEST."""
    dn = lax.conv_dimension_numbers(x_nchw.shape, w1.shape, ('NCHW', 'OIHW', 'NCHW'))
    out = lax.conv_general_dilated(x_nchw, w1, (1, 1), 'SAME', dimension_numbers=dn,
                                   precision=lax.Precision.HIGHEST)
    out = jnp.maximum(out + b1.reshape(1, -1, 1, 1), 0.0)
    out = lax.conv_general_dilated(out, w2, (1, 1), 'SAME', dimension_numbers=dn,
                                   precision=lax.Precision.HIGHEST)
    out = out + b2.reshape(1, -1, 1, 1)
    return out + x_nchw


if __name__ == "__main__":
    key = jax.random.PRNGKey(0)
    N, C, H, W = 2, 4, 16, 16   # small shapes consistent with the module

    k_x, k_w1, k_b1, k_w2, k_b2 = jax.random.split(key, 5)
    x_nchw = jax.random.normal(k_x, (N, C, H, W), dtype=jnp.float32)
    w1_oihw = jax.random.normal(k_w1, (C, C, 3, 3), dtype=jnp.float32) * 0.1
    b1 = jax.random.normal(k_b1, (C,), dtype=jnp.float32) * 0.1
    w2_oihw = jax.random.normal(k_w2, (C, C, 3, 3), dtype=jnp.float32) * 0.1
    b2 = jax.random.normal(k_b2, (C,), dtype=jnp.float32) * 0.1

    # max_strip_rows=8 -> 2 strips per image at this toy shape, exercising the halo logic.
    out = fast_residual_block(x_nchw, w1_oihw, b1, w2_oihw, b2, max_strip_rows=8)
    out = jax.block_until_ready(out)

    ref = _reference(x_nchw, w1_oihw, b1, w2_oihw, b2)
    assert out.shape == (N, C, H, W)
    # bf16 MXU operands with f32 accumulation -> ~1e-2-class relative error vs f32 HIGHEST.
    max_err = float(jnp.max(jnp.abs(out - ref)))
    assert jnp.allclose(out, ref, atol=3e-2, rtol=3e-2), \
        f"mismatch vs reference (max abs err {max_err})"

    print("KERNEL_OK")
</pallas_src>

<mosaic_0001>
module attributes {stable_mosaic.version = 11 : i64} {
  func.func @_fused_block_kernel(%arg0: i32, %arg1: i32, %arg2: memref<1x4x128xf32, #tpu.memory_space<vmem>>, %arg3: memref<1x4x128xf32, #tpu.memory_space<vmem>>, %arg4: memref<1x4x128xf32, #tpu.memory_space<vmem>>, %arg5: memref<4x36xbf16, #tpu.memory_space<vmem>>, %arg6: memref<4x1xf32, #tpu.memory_space<vmem>>, %arg7: memref<4x36xbf16, #tpu.memory_space<vmem>>, %arg8: memref<4x1xf32, #tpu.memory_space<vmem>>, %arg9: memref<1x4x128xf32, #tpu.memory_space<vmem>>, %arg10: memref<4x224xf32, #tpu.memory_space<vmem>>, %arg11: memref<4x192xf32, #tpu.memory_space<vmem>>) attributes {dimension_semantics = [#tpu.dimension_semantics<parallel>, #tpu.dimension_semantics<parallel>], iteration_bounds = array<i64: 2, 2>, scalar_prefetch = 0 : i64, scratch_operands = 2 : i64, tpu.core_type = #tpu.core_type<tc>, window_params = [{transform_indices = @transform_0, window_bounds = array<i64: 1, 4, 128>}, {transform_indices = @transform_1, window_bounds = array<i64: 1, 4, 128>}, {transform_indices = @transform_2, window_bounds = array<i64: 1, 4, 128>}, {pipeline_mode = #tpu.pipeline_mode<synchronous>, transform_indices = @transform_3, window_bounds = array<i64: 4, 36>}, {pipeline_mode = #tpu.pipeline_mode<synchronous>, transform_indices = @transform_4, window_bounds = array<i64: 4, 1>}, {pipeline_mode = #tpu.pipeline_mode<synchronous>, transform_indices = @transform_5, window_bounds = array<i64: 4, 36>}, {pipeline_mode = #tpu.pipeline_mode<synchronous>, transform_indices = @transform_6, window_bounds = array<i64: 4, 1>}, {transform_indices = @transform_7, window_bounds = array<i64: 1, 4, 128>}]} {
    %0 = tpu.iota {dimensions = array<i32: 1>} : vector<1x160xi32>
    %c16_i32 = arith.constant 16 : i32
    %c0_i32 = arith.constant 0 : i32
    %1 = arith.cmpi eq, %c16_i32, %c0_i32 : i32
    %c1_i32 = arith.constant 1 : i32
    %2 = arith.select %1, %c1_i32, %c16_i32 : i32
    %3 = vector.broadcast %2 : i32 to vector<1x160xi32>
    %4 = arith.remsi %0, %3 : vector<1x160xi32>
    %c0_i32_0 = arith.constant 0 : i32
    %5 = vector.broadcast %c0_i32_0 : i32 to vector<1x160xi32>
    %6 = arith.cmpi ne, %4, %5 : vector<1x160xi32>
    %c0_i32_1 = arith.constant 0 : i32
    %7 = vector.broadcast %c0_i32_1 : i32 to vector<1x160xi32>
    %8 = arith.cmpi slt, %4, %7 : vector<1x160xi32>
    %c0_i32_2 = arith.constant 0 : i32
    %9 = arith.cmpi slt, %2, %c0_i32_2 : i32
    %10 = vector.broadcast %9 : i1 to vector<1x160xi1>
    %11 = vector.broadcast %10 : vector<1x160xi1> to vector<1x160xi1>
    %12 = arith.xori %8, %11 : vector<1x160xi1>
    %13 = arith.andi %12, %6 : vector<1x160xi1>
    %14 = vector.broadcast %2 : i32 to vector<1x160xi32>
    %15 = arith.addi %4, %14 : vector<1x160xi32>
    %16 = arith.select %13, %15, %4 : vector<1x160xi1>, vector<1x160xi32>
    %c0_i32_3 = arith.constant 0 : i32
    %17 = vector.broadcast %c0_i32_3 : i32 to vector<1x160xi32>
    %18 = arith.cmpi ne, %16, %17 : vector<1x160xi32>
    %19 = arith.extui %18 : vector<1x160xi1> to vector<1x160xi32>
    %20 = arith.sitofp %19 : vector<1x160xi32> to vector<1x160xf32>
    %c15_i32 = arith.constant 15 : i32
    %21 = vector.broadcast %c15_i32 : i32 to vector<1x160xi32>
    %22 = arith.cmpi ne, %16, %21 : vector<1x160xi32>
    %23 = arith.extui %22 : vector<1x160xi1> to vector<1x160xi32>
    %24 = arith.sitofp %23 : vector<1x160xi32> to vector<1x160xf32>
    %cst = arith.constant 0.000000e+00 : f32
    %25 = vector.broadcast %cst : f32 to vector<4x16xf32>
    %c0 = arith.constant 0 : index
    %c0_4 = arith.constant 0 : index
    %26 = vector.load %arg10[%c0, %c0_4] : memref<4x224xf32, #tpu.memory_space<vmem>>, vector<4x16xf32>
    tpu.vector_store %arg10[%c0, %c0_4], %25 {strides = array<i32>} : memref<4x224xf32, #tpu.memory_space<vmem>>, vector<4x16xf32>,
    %c0_5 = arith.constant 0 : index
    %c208 = arith.constant 208 : index
    %27 = vector.load %arg10[%c0_5, %c208] : memref<4x224xf32, #tpu.memory_space<vmem>>, vector<4x16xf32>
    tpu.vector_store %arg10[%c0_5, %c208], %25 {strides = array<i32>} : memref<4x224xf32, #tpu.memory_space<vmem>>, vector<4x16xf32>,
    %c0_i32_6 = arith.constant 0 : i32
    %28 = arith.cmpi sgt, %arg1, %c0_i32_6 : i32
    %29 = arith.extui %28 : i1 to i32
    %c0_i32_7 = arith.constant 0 : i32
    %30 = arith.cmpi ne, %29, %c0_i32_7 : i32
    scf.if %30 {
      %c0_204 = arith.constant 0 : index
      %c0_205 = arith.constant 0 : index
      %c96 = arith.constant 96 : index
      %247 = vector.load %arg3[%c0_204, %c0_205, %c96] : memref<1x4x128xf32, #tpu.memory_space<vmem>>, vector<1x4x32xf32>
      %248 = vector.shape_cast %247 : vector<1x4x32xf32> to vector<4x32xf32>
      %c0_206 = arith.constant 0 : index
      %c16_207 = arith.constant 16 : index
      %249 = vector.load %arg10[%c0_206, %c16_207] : memref<4x224xf32, #tpu.memory_space<vmem>>, vector<4x32xf32>
      tpu.vector_store %arg10[%c0_206, %c16_207], %248 {strides = array<i32>} : memref<4x224xf32, #tpu.memory_space<vmem>>, vector<4x32xf32>,
    } else {
    }
    %c0_i32_8 = arith.constant 0 : i32
    %31 = arith.cmpi eq, %arg1, %c0_i32_8 : i32
    %32 = arith.extui %31 : i1 to i32
    %c0_i32_9 = arith.constant 0 : i32
    %33 = arith.cmpi ne, %32, %c0_i32_9 : i32
    scf.if %33 {
      %cst_204 = arith.constant 0.000000e+00 : f32
      %247 = vector.broadcast %cst_204 : f32 to vector<4x32xf32>
      %c0_205 = arith.constant 0 : index
      %c16_206 = arith.constant 16 : index
      %248 = vector.load %arg10[%c0_205, %c16_206] : memref<4x224xf32, #tpu.memory_space<vmem>>, vector<4x32xf32>
      tpu.vector_store %arg10[%c0_205, %c16_206], %247 {strides = array<i32>} : memref<4x224xf32, #tpu.memory_space<vmem>>, vector<4x32xf32>,
    } else {
    }
    %c0_10 = arith.constant 0 : index
    %c0_11 = arith.constant 0 : index
    %c0_12 = arith.constant 0 : index
    %34 = vector.load %arg2[%c0_10, %c0_11, %c0_12] : memref<1x4x128xf32, #tpu.memory_space<vmem>>, vector<1x4x128xf32>
    %35 = vector.shape_cast %34 : vector<1x4x128xf32> to vector<4x128xf32>
    %c0_13 = arith.constant 0 : index
    %c48 = arith.constant 48 : index
    %36 = vector.load %arg10[%c0_13, %c48] : memref<4x224xf32, #tpu.memory_space<vmem>>, vector<4x128xf32>
    tpu.vector_store %arg10[%c0_13, %c48], %35 {strides = array<i32>} : memref<4x224xf32, #tpu.memory_space<vmem>>, vector<4x128xf32>,
    %c1_i32_14 = arith.constant 1 : i32
    %37 = arith.cmpi slt, %arg1, %c1_i32_14 : i32
    %38 = arith.extui %37 : i1 to i32
    %c0_i32_15 = arith.constant 0 : i32
    %39 = arith.cmpi ne, %38, %c0_i32_15 : i32
    scf.if %39 {
      %c0_204 = arith.constant 0 : index
      %c0_205 = arith.constant 0 : index
      %c0_206 = arith.constant 0 : index
      %247 = vector.load %arg4[%c0_204, %c0_205, %c0_206] : memref<1x4x128xf32, #tpu.memory_space<vmem>>, vector<1x4x32xf32>
      %248 = vector.shape_cast %247 : vector<1x4x32xf32> to vector<4x32xf32>
      %c0_207 = arith.constant 0 : index
      %c176_208 = arith.constant 176 : index
      %249 = vector.load %arg10[%c0_207, %c176_208] : memref<4x224xf32, #tpu.memory_space<vmem>>, vector<4x32xf32>
      tpu.vector_store %arg10[%c0_207, %c176_208], %248 {strides = array<i32>} : memref<4x224xf32, #tpu.memory_space<vmem>>, vector<4x32xf32>,
    } else {
    }
    %c1_i32_16 = arith.constant 1 : i32
    %40 = arith.cmpi eq, %arg1, %c1_i32_16 : i32
    %41 = arith.extui %40 : i1 to i32
    %c0_i32_17 = arith.constant 0 : i32
    %42 = arith.cmpi ne, %41, %c0_i32_17 : i32
    scf.if %42 {
      %cst_204 = arith.constant 0.000000e+00 : f32
      %247 = vector.broadcast %cst_204 : f32 to vector<4x32xf32>
      %c0_205 = arith.constant 0 : index
      %c176_206 = arith.constant 176 : index
      %248 = vector.load %arg10[%c0_205, %c176_206] : memref<4x224xf32, #tpu.memory_space<vmem>>, vector<4x32xf32>
      tpu.vector_store %arg10[%c0_205, %c176_206], %247 {strides = array<i32>} : memref<4x224xf32, #tpu.memory_space<vmem>>, vector<4x32xf32>,
    } else {
    }
    %c0_18 = arith.constant 0 : index
    %c0_19 = arith.constant 0 : index
    %43 = vector.load %arg11[%c0_18, %c0_19] : memref<4x192xf32, #tpu.memory_space<vmem>>, vector<4x16xf32>
    tpu.vector_store %arg11[%c0_18, %c0_19], %25 {strides = array<i32>} : memref<4x192xf32, #tpu.memory_space<vmem>>, vector<4x16xf32>,
    %c0_20 = arith.constant 0 : index
    %c176 = arith.constant 176 : index
    %44 = vector.load %arg11[%c0_20, %c176] : memref<4x192xf32, #tpu.memory_space<vmem>>, vector<4x16xf32>
    tpu.vector_store %arg11[%c0_20, %c176], %25 {strides = array<i32>} : memref<4x192xf32, #tpu.memory_space<vmem>>, vector<4x16xf32>,
    %c0_21 = arith.constant 0 : index
    %c15 = arith.constant 15 : index
    %45 = vector.load %arg10[%c0_21, %c15] : memref<4x224xf32, #tpu.memory_space<vmem>>, vector<4x160xf32>
    %46 = vector.broadcast %20 : vector<1x160xf32> to vector<4x160xf32>
    %47 = arith.mulf %45, %46 : vector<4x160xf32>
    %c0_22 = arith.constant 0 : index
    %c0_23 = arith.constant 0 : index
    %48 = vector.load %arg5[%c0_22, %c0_23] : memref<4x36xbf16, #tpu.memory_space<vmem>>, vector<4x4xbf16>
    %49 = arith.truncf %47 : vector<4x160xf32> to vector<4x160xbf16>
    %cst_24 = arith.constant dense<0.000000e+00> : vector<4x160xf32>
    %50 = tpu.matmul %48, %49, %cst_24 {dimension_numbers = #tpu.dot_dimension_numbers<[1], [0], [0], [1], [0, 0, 1, 1], [], []>} : vector<4x4xbf16>, vector<4x160xbf16>, vector<4x160xf32> -> vector<4x160xf32>
    %c0_25 = arith.constant 0 : index
    %c16 = arith.constant 16 : index
    %51 = vector.load %arg11[%c0_25, %c16] : memref<4x192xf32, #tpu.memory_space<vmem>>, vector<4x160xf32>
    tpu.vector_store %arg11[%c0_25, %c16], %50 {strides = array<i32>} : memref<4x192xf32, #tpu.memory_space<vmem>>, vector<4x160xf32>,
    %c0_26 = arith.constant 0 : index
    %c16_27 = arith.constant 16 : index
    %52 = vector.load %arg10[%c0_26, %c16_27] : memref<4x224xf32, #tpu.memory_space<vmem>>, vector<4x160xf32>
    %c0_28 = arith.constant 0 : index
    %c4 = arith.constant 4 : index
    %53 = vector.load %arg5[%c0_28, %c4] : memref<4x36xbf16, #tpu.memory_space<vmem>>, vector<4x4xbf16>
    %54 = arith.truncf %52 : vector<4x160xf32> to vector<4x160xbf16>
    %cst_29 = arith.constant dense<0.000000e+00> : vector<4x160xf32>
    %55 = tpu.matmul %53, %54, %cst_29 {dimension_numbers = #tpu.dot_dimension_numbers<[1], [0], [0], [1], [0, 0, 1, 1], [], []>} : vector<4x4xbf16>, vector<4x160xbf16>, vector<4x160xf32> -> vector<4x160xf32>
    %c0_30 = arith.constant 0 : index
    %c16_31 = arith.constant 16 : index
    %56 = vector.load %arg11[%c0_30, %c16_31] : memref<4x192xf32, #tpu.memory_space<vmem>>, vector<4x160xf32>
    %57 = arith.addf %56, %55 : vector<4x160xf32>
    %c0_32 = arith.constant 0 : index
    %c16_33 = arith.constant 16 : index
    %58 = vector.load %arg11[%c0_32, %c16_33] : memref<4x192xf32, #tpu.memory_space<vmem>>, vector<4x160xf32>
    tpu.vector_store %arg11[%c0_32, %c16_33], %57 {strides = array<i32>} : memref<4x192xf32, #tpu.memory_space<vmem>>, vector<4x160xf32>,
    %c0_34 = arith.constant 0 : index
    %c17 = arith.constant 17 : index
    %59 = vector.load %arg10[%c0_34, %c17] : memref<4x224xf32, #tpu.memory_space<vmem>>, vector<4x160xf32>
    %60 = vector.broadcast %24 : vector<1x160xf32> to vector<4x160xf32>
    %61 = arith.mulf %59, %60 : vector<4x160xf32>
    %c0_35 = arith.constant 0 : index
    %c8 = arith.constant 8 : index
    %62 = vector.load %arg5[%c0_35, %c8] : memref<4x36xbf16, #tpu.memory_space<vmem>>, vector<4x4xbf16>
    %63 = arith.truncf %61 : vector<4x160xf32> to vector<4x160xbf16>
    %cst_36 = arith.constant dense<0.000000e+00> : vector<4x160xf32>
    %64 = tpu.matmul %62, %63, %cst_36 {dimension_numbers = #tpu.dot_dimension_numbers<[1], [0], [0], [1], [0, 0, 1, 1], [], []>} : vector<4x4xbf16>, vector<4x160xbf16>, vector<4x160xf32> -> vector<4x160xf32>
    %c0_37 = arith.constant 0 : index
    %c16_38 = arith.constant 16 : index
    %65 = vector.load %arg11[%c0_37, %c16_38] : memref<4x192xf32, #tpu.memory_space<vmem>>, vector<4x160xf32>
    %66 = arith.addf %65, %64 : vector<4x160xf32>
    %c0_39 = arith.constant 0 : index
    %c16_40 = arith.constant 16 : index
    %67 = vector.load %arg11[%c0_39, %c16_40] : memref<4x192xf32, #tpu.memory_space<vmem>>, vector<4x160xf32>
    tpu.vector_store %arg11[%c0_39, %c16_40], %66 {strides = array<i32>} : memref<4x192xf32, #tpu.memory_space<vmem>>, vector<4x160xf32>,
    %c0_41 = arith.constant 0 : index
    %c31 = arith.constant 31 : index
    %68 = vector.load %arg10[%c0_41, %c31] : memref<4x224xf32, #tpu.memory_space<vmem>>, vector<4x160xf32>
    %69 = vector.broadcast %20 : vector<1x160xf32> to vector<4x160xf32>
    %70 = arith.mulf %68, %69 : vector<4x160xf32>
    %c0_42 = arith.constant 0 : index
    %c12 = arith.constant 12 : index
    %71 = vector.load %arg5[%c0_42, %c12] : memref<4x36xbf16, #tpu.memory_space<vmem>>, vector<4x4xbf16>
    %72 = arith.truncf %70 : vector<4x160xf32> to vector<4x160xbf16>
    %cst_43 = arith.constant dense<0.000000e+00> : vector<4x160xf32>
    %73 = tpu.matmul %71, %72, %cst_43 {dimension_numbers = #tpu.dot_dimension_numbers<[1], [0], [0], [1], [0, 0, 1, 1], [], []>} : vector<4x4xbf16>, vector<4x160xbf16>, vector<4x160xf32> -> vector<4x160xf32>
    %c0_44 = arith.constant 0 : index
    %c16_45 = arith.constant 16 : index
    %74 = vector.load %arg11[%c0_44, %c16_45] : memref<4x192xf32, #tpu.memory_space<vmem>>, vector<4x160xf32>
    %75 = arith.addf %74, %73 : vector<4x160xf32>
    %c0_46 = arith.constant 0 : index
    %c16_47 = arith.constant 16 : index
    %76 = vector.load %arg11[%c0_46, %c16_47] : memref<4x192xf32, #tpu.memory_space<vmem>>, vector<4x160xf32>
    tpu.vector_store %arg11[%c0_46, %c16_47], %75 {strides = array<i32>} : memref<4x192xf32, #tpu.memory_space<vmem>>, vector<4x160xf32>,
    %c0_48 = arith.constant 0 : index
    %c32 = arith.constant 32 : index
    %77 = vector.load %arg10[%c0_48, %c32] : memref<4x224xf32, #tpu.memory_space<vmem>>, vector<4x160xf32>
    %c0_49 = arith.constant 0 : index
    %c16_50 = arith.constant 16 : index
    %78 = vector.load %arg5[%c0_49, %c16_50] : memref<4x36xbf16, #tpu.memory_space<vmem>>, vector<4x4xbf16>
    %79 = arith.truncf %77 : vector<4x160xf32> to vector<4x160xbf16>
    %cst_51 = arith.constant dense<0.000000e+00> : vector<4x160xf32>
    %80 = tpu.matmul %78, %79, %cst_51 {dimension_numbers = #tpu.dot_dimension_numbers<[1], [0], [0], [1], [0, 0, 1, 1], [], []>} : vector<4x4xbf16>, vector<4x160xbf16>, vector<4x160xf32> -> vector<4x160xf32>
    %c0_52 = arith.constant 0 : index
    %c16_53 = arith.constant 16 : index
    %81 = vector.load %arg11[%c0_52, %c16_53] : memref<4x192xf32, #tpu.memory_space<vmem>>, vector<4x160xf32>
    %82 = arith.addf %81, %80 : vector<4x160xf32>
    %c0_54 = arith.constant 0 : index
    %c16_55 = arith.constant 16 : index
    %83 = vector.load %arg11[%c0_54, %c16_55] : memref<4x192xf32, #tpu.memory_space<vmem>>, vector<4x160xf32>
    tpu.vector_store %arg11[%c0_54, %c16_55], %82 {strides = array<i32>} : memref<4x192xf32, #tpu.memory_space<vmem>>, vector<4x160xf32>,
    %c0_56 = arith.constant 0 : index
    %c33 = arith.constant 33 : index
    %84 = vector.load %arg10[%c0_56, %c33] : memref<4x224xf32, #tpu.memory_space<vmem>>, vector<4x160xf32>
    %85 = vector.broadcast %24 : vector<1x160xf32> to vector<4x160xf32>
    %86 = arith.mulf %84, %85 : vector<4x160xf32>
    %c0_57 = arith.constant 0 : index
    %c20 = arith.constant 20 : index
    %87 = vector.load %arg5[%c0_57, %c20] : memref<4x36xbf16, #tpu.memory_space<vmem>>, vector<4x4xbf16>
    %88 = arith.truncf %86 : vector<4x160xf32> to vector<4x160xbf16>
    %cst_58 = arith.constant dense<0.000000e+00> : vector<4x160xf32>
    %89 = tpu.matmul %87, %88, %cst_58 {dimension_numbers = #tpu.dot_dimension_numbers<[1], [0], [0], [1], [0, 0, 1, 1], [], []>} : vector<4x4xbf16>, vector<4x160xbf16>, vector<4x160xf32> -> vector<4x160xf32>
    %c0_59 = arith.constant 0 : index
    %c16_60 = arith.constant 16 : index
    %90 = vector.load %arg11[%c0_59, %c16_60] : memref<4x192xf32, #tpu.memory_space<vmem>>, vector<4x160xf32>
    %91 = arith.addf %90, %89 : vector<4x160xf32>
    %c0_61 = arith.constant 0 : index
    %c16_62 = arith.constant 16 : index
    %92 = vector.load %arg11[%c0_61, %c16_62] : memref<4x192xf32, #tpu.memory_space<vmem>>, vector<4x160xf32>
    tpu.vector_store %arg11[%c0_61, %c16_62], %91 {strides = array<i32>} : memref<4x192xf32, #tpu.memory_space<vmem>>, vector<4x160xf32>,
    %c0_63 = arith.constant 0 : index
    %c47 = arith.constant 47 : index
    %93 = vector.load %arg10[%c0_63, %c47] : memref<4x224xf32, #tpu.memory_space<vmem>>, vector<4x160xf32>
    %94 = vector.broadcast %20 : vector<1x160xf32> to vector<4x160xf32>
    %95 = arith.mulf %93, %94 : vector<4x160xf32>
    %c0_64 = arith.constant 0 : index
    %c24 = arith.constant 24 : index
    %96 = vector.load %arg5[%c0_64, %c24] : memref<4x36xbf16, #tpu.memory_space<vmem>>, vector<4x4xbf16>
    %97 = arith.truncf %95 : vector<4x160xf32> to vector<4x160xbf16>
    %cst_65 = arith.constant dense<0.000000e+00> : vector<4x160xf32>
    %98 = tpu.matmul %96, %97, %cst_65 {dimension_numbers = #tpu.dot_dimension_numbers<[1], [0], [0], [1], [0, 0, 1, 1], [], []>} : vector<4x4xbf16>, vector<4x160xbf16>, vector<4x160xf32> -> vector<4x160xf32>
    %c0_66 = arith.constant 0 : index
    %c16_67 = arith.constant 16 : index
    %99 = vector.load %arg11[%c0_66, %c16_67] : memref<4x192xf32, #tpu.memory_space<vmem>>, vector<4x160xf32>
    %100 = arith.addf %99, %98 : vector<4x160xf32>
    %c0_68 = arith.constant 0 : index
    %c16_69 = arith.constant 16 : index
    %101 = vector.load %arg11[%c0_68, %c16_69] : memref<4x192xf32, #tpu.memory_space<vmem>>, vector<4x160xf32>
    tpu.vector_store %arg11[%c0_68, %c16_69], %100 {strides = array<i32>} : memref<4x192xf32, #tpu.memory_space<vmem>>, vector<4x160xf32>,
    %c0_70 = arith.constant 0 : index
    %c48_71 = arith.constant 48 : index
    %102 = vector.load %arg10[%c0_70, %c48_71] : memref<4x224xf32, #tpu.memory_space<vmem>>, vector<4x160xf32>
    %c0_72 = arith.constant 0 : index
    %c28 = arith.constant 28 : index
    %103 = vector.load %arg5[%c0_72, %c28] : memref<4x36xbf16, #tpu.memory_space<vmem>>, vector<4x4xbf16>
    %104 = arith.truncf %102 : vector<4x160xf32> to vector<4x160xbf16>
    %cst_73 = arith.constant dense<0.000000e+00> : vector<4x160xf32>
    %105 = tpu.matmul %103, %104, %cst_73 {dimension_numbers = #tpu.dot_dimension_numbers<[1], [0], [0], [1], [0, 0, 1, 1], [], []>} : vector<4x4xbf16>, vector<4x160xbf16>, vector<4x160xf32> -> vector<4x160xf32>
    %c0_74 = arith.constant 0 : index
    %c16_75 = arith.constant 16 : index
    %106 = vector.load %arg11[%c0_74, %c16_75] : memref<4x192xf32, #tpu.memory_space<vmem>>, vector<4x160xf32>
    %107 = arith.addf %106, %105 : vector<4x160xf32>
    %c0_76 = arith.constant 0 : index
    %c16_77 = arith.constant 16 : index
    %108 = vector.load %arg11[%c0_76, %c16_77] : memref<4x192xf32, #tpu.memory_space<vmem>>, vector<4x160xf32>
    tpu.vector_store %arg11[%c0_76, %c16_77], %107 {strides = array<i32>} : memref<4x192xf32, #tpu.memory_space<vmem>>, vector<4x160xf32>,
    %c0_78 = arith.constant 0 : index
    %c49 = arith.constant 49 : index
    %109 = vector.load %arg10[%c0_78, %c49] : memref<4x224xf32, #tpu.memory_space<vmem>>, vector<4x160xf32>
    %110 = vector.broadcast %24 : vector<1x160xf32> to vector<4x160xf32>
    %111 = arith.mulf %109, %110 : vector<4x160xf32>
    %c0_79 = arith.constant 0 : index
    %c32_80 = arith.constant 32 : index
    %112 = vector.load %arg5[%c0_79, %c32_80] : memref<4x36xbf16, #tpu.memory_space<vmem>>, vector<4x4xbf16>
    %113 = arith.truncf %111 : vector<4x160xf32> to vector<4x160xbf16>
    %cst_81 = arith.constant dense<0.000000e+00> : vector<4x160xf32>
    %114 = tpu.matmul %112, %113, %cst_81 {dimension_numbers = #tpu.dot_dimension_numbers<[1], [0], [0], [1], [0, 0, 1, 1], [], []>} : vector<4x4xbf16>, vector<4x160xbf16>, vector<4x160xf32> -> vector<4x160xf32>
    %c0_82 = arith.constant 0 : index
    %c16_83 = arith.constant 16 : index
    %115 = vector.load %arg11[%c0_82, %c16_83] : memref<4x192xf32, #tpu.memory_space<vmem>>, vector<4x160xf32>
    %116 = arith.addf %115, %114 : vector<4x160xf32>
    %c0_84 = arith.constant 0 : index
    %c16_85 = arith.constant 16 : index
    %117 = vector.load %arg11[%c0_84, %c16_85] : memref<4x192xf32, #tpu.memory_space<vmem>>, vector<4x160xf32>
    tpu.vector_store %arg11[%c0_84, %c16_85], %116 {strides = array<i32>} : memref<4x192xf32, #tpu.memory_space<vmem>>, vector<4x160xf32>,
    %c0_86 = arith.constant 0 : index
    %c16_87 = arith.constant 16 : index
    %118 = vector.load %arg11[%c0_86, %c16_87] : memref<4x192xf32, #tpu.memory_space<vmem>>, vector<4x160xf32>
    %c0_88 = arith.constant 0 : index
    %c0_89 = arith.constant 0 : index
    %119 = vector.load %arg6[%c0_88, %c0_89] : memref<4x1xf32, #tpu.memory_space<vmem>>, vector<4x1xf32>
    %120 = vector.broadcast %119 : vector<4x1xf32> to vector<4x160xf32>
    %121 = arith.addf %118, %120 : vector<4x160xf32>
    %cst_90 = arith.constant 0.000000e+00 : f32
    %122 = vector.broadcast %cst_90 : f32 to vector<4x160xf32>
    %123 = arith.maximumf %121, %122 : vector<4x160xf32>
    %c0_91 = arith.constant 0 : index
    %c16_92 = arith.constant 16 : index
    %124 = vector.load %arg11[%c0_91, %c16_92] : memref<4x192xf32, #tpu.memory_space<vmem>>, vector<4x160xf32>
    tpu.vector_store %arg11[%c0_91, %c16_92], %123 {strides = array<i32>} : memref<4x192xf32, #tpu.memory_space<vmem>>, vector<4x160xf32>,
    %c0_i32_93 = arith.constant 0 : i32
    %125 = arith.cmpi eq, %arg1, %c0_i32_93 : i32
    %126 = arith.extui %125 : i1 to i32
    %c0_i32_94 = arith.constant 0 : i32
    %127 = arith.cmpi ne, %126, %c0_i32_94 : i32
    scf.if %127 {
      %c0_204 = arith.constant 0 : index
      %c16_205 = arith.constant 16 : index
      %247 = vector.load %arg11[%c0_204, %c16_205] : memref<4x192xf32, #tpu.memory_space<vmem>>, vector<4x16xf32>
      tpu.vector_store %arg11[%c0_204, %c16_205], %25 {strides = array<i32>} : memref<4x192xf32, #tpu.memory_space<vmem>>, vector<4x16xf32>,
    } else {
    }
    %c1_i32_95 = arith.constant 1 : i32
    %128 = arith.cmpi eq, %arg1, %c1_i32_95 : i32
    %129 = arith.extui %128 : i1 to i32
    %c0_i32_96 = arith.constant 0 : i32
    %130 = arith.cmpi ne, %129, %c0_i32_96 : i32
    scf.if %130 {
      %c0_204 = arith.constant 0 : index
      %c160 = arith.constant 160 : index
      %247 = vector.load %arg11[%c0_204, %c160] : memref<4x192xf32, #tpu.memory_space<vmem>>, vector<4x16xf32>
      tpu.vector_store %arg11[%c0_204, %c160], %25 {strides = array<i32>} : memref<4x192xf32, #tpu.memory_space<vmem>>, vector<4x16xf32>,
    } else {
    }
    %c0_97 = arith.constant 0 : index
    %c15_98 = arith.constant 15 : index
    %131 = vector.load %arg11[%c0_97, %c15_98] : memref<4x192xf32, #tpu.memory_space<vmem>>, vector<4x128xf32>
    %132 = vector.extract_strided_slice %20 {offsets = [0, 0], sizes = [1, 128], strides = [1, 1]} : vector<1x160xf32> to vector<1x128xf32>
    %133 = vector.broadcast %132 : vector<1x128xf32> to vector<4x128xf32>
    %134 = arith.mulf %131, %133 : vector<4x128xf32>
    %c0_99 = arith.constant 0 : index
    %c0_100 = arith.constant 0 : index
    %135 = vector.load %arg7[%c0_99, %c0_100] : memref<4x36xbf16, #tpu.memory_space<vmem>>, vector<4x4xbf16>
    %136 = arith.truncf %134 : vector<4x128xf32> to vector<4x128xbf16>
    %cst_101 = arith.constant dense<0.000000e+00> : vector<4x128xf32>
    %137 = tpu.matmul %135, %136, %cst_101 {dimension_numbers = #tpu.dot_dimension_numbers<[1], [0], [0], [1], [0, 0, 1, 1], [], []>} : vector<4x4xbf16>, vector<4x128xbf16>, vector<4x128xf32> -> vector<4x128xf32>
    %c0_102 = arith.constant 0 : index
    %c0_103 = arith.constant 0 : index
    %c0_104 = arith.constant 0 : index
    %138 = vector.load %arg9[%c0_102, %c0_103, %c0_104] : memref<1x4x128xf32, #tpu.memory_space<vmem>>, vector<1x4x128xf32>
    %139 = vector.shape_cast %138 : vector<1x4x128xf32> to vector<4x128xf32>
    %140 = vector.shape_cast %137 : vector<4x128xf32> to vector<1x4x128xf32>
    tpu.vector_store %arg9[%c0_102, %c0_103, %c0_104], %140 {strides = array<i32>} : memref<1x4x128xf32, #tpu.memory_space<vmem>>, vector<1x4x128xf32>,
    %c0_105 = arith.constant 0 : index
    %c16_106 = arith.constant 16 : index
    %141 = vector.load %arg11[%c0_105, %c16_106] : memref<4x192xf32, #tpu.memory_space<vmem>>, vector<4x128xf32>
    %c0_107 = arith.constant 0 : index
    %c4_108 = arith.constant 4 : index
    %142 = vector.load %arg7[%c0_107, %c4_108] : memref<4x36xbf16, #tpu.memory_space<vmem>>, vector<4x4xbf16>
    %143 = arith.truncf %141 : vector<4x128xf32> to vector<4x128xbf16>
    %cst_109 = arith.constant dense<0.000000e+00> : vector<4x128xf32>
    %144 = tpu.matmul %142, %143, %cst_109 {dimension_numbers = #tpu.dot_dimension_numbers<[1], [0], [0], [1], [0, 0, 1, 1], [], []>} : vector<4x4xbf16>, vector<4x128xbf16>, vector<4x128xf32> -> vector<4x128xf32>
    %c0_110 = arith.constant 0 : index
    %c0_111 = arith.constant 0 : index
    %c0_112 = arith.constant 0 : index
    %145 = vector.load %arg9[%c0_110, %c0_111, %c0_112] : memref<1x4x128xf32, #tpu.memory_space<vmem>>, vector<1x4x128xf32>
    %146 = vector.shape_cast %145 : vector<1x4x128xf32> to vector<4x128xf32>
    %147 = arith.addf %146, %144 : vector<4x128xf32>
    %c0_113 = arith.constant 0 : index
    %c0_114 = arith.constant 0 : index
    %c0_115 = arith.constant 0 : index
    %148 = vector.load %arg9[%c0_113, %c0_114, %c0_115] : memref<1x4x128xf32, #tpu.memory_space<vmem>>, vector<1x4x128xf32>
    %149 = vector.shape_cast %148 : vector<1x4x128xf32> to vector<4x128xf32>
    %150 = vector.shape_cast %147 : vector<4x128xf32> to vector<1x4x128xf32>
    tpu.vector_store %arg9[%c0_113, %c0_114, %c0_115], %150 {strides = array<i32>} : memref<1x4x128xf32, #tpu.memory_space<vmem>>, vector<1x4x128xf32>,
    %c0_116 = arith.constant 0 : index
    %c17_117 = arith.constant 17 : index
    %151 = vector.load %arg11[%c0_116, %c17_117] : memref<4x192xf32, #tpu.memory_space<vmem>>, vector<4x128xf32>
    %152 = vector.extract_strided_slice %24 {offsets = [0, 0], sizes = [1, 128], strides = [1, 1]} : vector<1x160xf32> to vector<1x128xf32>
    %153 = vector.broadcast %152 : vector<1x128xf32> to vector<4x128xf32>
    %154 = arith.mulf %151, %153 : vector<4x128xf32>
    %c0_118 = arith.constant 0 : index
    %c8_119 = arith.constant 8 : index
    %155 = vector.load %arg7[%c0_118, %c8_119] : memref<4x36xbf16, #tpu.memory_space<vmem>>, vector<4x4xbf16>
    %156 = arith.truncf %154 : vector<4x128xf32> to vector<4x128xbf16>
    %cst_120 = arith.constant dense<0.000000e+00> : vector<4x128xf32>
    %157 = tpu.matmul %155, %156, %cst_120 {dimension_numbers = #tpu.dot_dimension_numbers<[1], [0], [0], [1], [0, 0, 1, 1], [], []>} : vector<4x4xbf16>, vector<4x128xbf16>, vector<4x128xf32> -> vector<4x128xf32>
    %c0_121 = arith.constant 0 : index
    %c0_122 = arith.constant 0 : index
    %c0_123 = arith.constant 0 : index
    %158 = vector.load %arg9[%c0_121, %c0_122, %c0_123] : memref<1x4x128xf32, #tpu.memory_space<vmem>>, vector<1x4x128xf32>
    %159 = vector.shape_cast %158 : vector<1x4x128xf32> to vector<4x128xf32>
    %160 = arith.addf %159, %157 : vector<4x128xf32>
    %c0_124 = arith.constant 0 : index
    %c0_125 = arith.constant 0 : index
    %c0_126 = arith.constant 0 : index
    %161 = vector.load %arg9[%c0_124, %c0_125, %c0_126] : memref<1x4x128xf32, #tpu.memory_space<vmem>>, vector<1x4x128xf32>
    %162 = vector.shape_cast %161 : vector<1x4x128xf32> to vector<4x128xf32>
    %163 = vector.shape_cast %160 : vector<4x128xf32> to vector<1x4x128xf32>
    tpu.vector_store %arg9[%c0_124, %c0_125, %c0_126], %163 {strides = array<i32>} : memref<1x4x128xf32, #tpu.memory_space<vmem>>, vector<1x4x128xf32>,
    %c0_127 = arith.constant 0 : index
    %c31_128 = arith.constant 31 : index
    %164 = vector.load %arg11[%c0_127, %c31_128] : memref<4x192xf32, #tpu.memory_space<vmem>>, vector<4x128xf32>
    %165 = vector.extract_strided_slice %20 {offsets = [0, 0], sizes = [1, 128], strides = [1, 1]} : vector<1x160xf32> to vector<1x128xf32>
    %166 = vector.broadcast %165 : vector<1x128xf32> to vector<4x128xf32>
    %167 = arith.mulf %164, %166 : vector<4x128xf32>
    %c0_129 = arith.constant 0 : index
    %c12_130 = arith.constant 12 : index
    %168 = vector.load %arg7[%c0_129, %c12_130] : memref<4x36xbf16, #tpu.memory_space<vmem>>, vector<4x4xbf16>
    %169 = arith.truncf %167 : vector<4x128xf32> to vector<4x128xbf16>
    %cst_131 = arith.constant dense<0.000000e+00> : vector<4x128xf32>
    %170 = tpu.matmul %168, %169, %cst_131 {dimension_numbers = #tpu.dot_dimension_numbers<[1], [0], [0], [1], [0, 0, 1, 1], [], []>} : vector<4x4xbf16>, vector<4x128xbf16>, vector<4x128xf32> -> vector<4x128xf32>
    %c0_132 = arith.constant 0 : index
    %c0_133 = arith.constant 0 : index
    %c0_134 = arith.constant 0 : index
    %171 = vector.load %arg9[%c0_132, %c0_133, %c0_134] : memref<1x4x128xf32, #tpu.memory_space<vmem>>, vector<1x4x128xf32>
    %172 = vector.shape_cast %171 : vector<1x4x128xf32> to vector<4x128xf32>
    %173 = arith.addf %172, %170 : vector<4x128xf32>
    %c0_135 = arith.constant 0 : index
    %c0_136 = arith.constant 0 : index
    %c0_137 = arith.constant 0 : index
    %174 = vector.load %arg9[%c0_135, %c0_136, %c0_137] : memref<1x4x128xf32, #tpu.memory_space<vmem>>, vector<1x4x128xf32>
    %175 = vector.shape_cast %174 : vector<1x4x128xf32> to vector<4x128xf32>
    %176 = vector.shape_cast %173 : vector<4x128xf32> to vector<1x4x128xf32>
    tpu.vector_store %arg9[%c0_135, %c0_136, %c0_137], %176 {strides = array<i32>} : memref<1x4x128xf32, #tpu.memory_space<vmem>>, vector<1x4x128xf32>,
    %c0_138 = arith.constant 0 : index
    %c32_139 = arith.constant 32 : index
    %177 = vector.load %arg11[%c0_138, %c32_139] : memref<4x192xf32, #tpu.memory_space<vmem>>, vector<4x128xf32>
    %c0_140 = arith.constant 0 : index
    %c16_141 = arith.constant 16 : index
    %178 = vector.load %arg7[%c0_140, %c16_141] : memref<4x36xbf16, #tpu.memory_space<vmem>>, vector<4x4xbf16>
    %179 = arith.truncf %177 : vector<4x128xf32> to vector<4x128xbf16>
    %cst_142 = arith.constant dense<0.000000e+00> : vector<4x128xf32>
    %180 = tpu.matmul %178, %179, %cst_142 {dimension_numbers = #tpu.dot_dimension_numbers<[1], [0], [0], [1], [0, 0, 1, 1], [], []>} : vector<4x4xbf16>, vector<4x128xbf16>, vector<4x128xf32> -> vector<4x128xf32>
    %c0_143 = arith.constant 0 : index
    %c0_144 = arith.constant 0 : index
    %c0_145 = arith.constant 0 : index
    %181 = vector.load %arg9[%c0_143, %c0_144, %c0_145] : memref<1x4x128xf32, #tpu.memory_space<vmem>>, vector<1x4x128xf32>
    %182 = vector.shape_cast %181 : vector<1x4x128xf32> to vector<4x128xf32>
    %183 = arith.addf %182, %180 : vector<4x128xf32>
    %c0_146 = arith.constant 0 : index
    %c0_147 = arith.constant 0 : index
    %c0_148 = arith.constant 0 : index
    %184 = vector.load %arg9[%c0_146, %c0_147, %c0_148] : memref<1x4x128xf32, #tpu.memory_space<vmem>>, vector<1x4x128xf32>
    %185 = vector.shape_cast %184 : vector<1x4x128xf32> to vector<4x128xf32>
    %186 = vector.shape_cast %183 : vector<4x128xf32> to vector<1x4x128xf32>
    tpu.vector_store %arg9[%c0_146, %c0_147, %c0_148], %186 {strides = array<i32>} : memref<1x4x128xf32, #tpu.memory_space<vmem>>, vector<1x4x128xf32>,
    %c0_149 = arith.constant 0 : index
    %c33_150 = arith.constant 33 : index
    %187 = vector.load %arg11[%c0_149, %c33_150] : memref<4x192xf32, #tpu.memory_space<vmem>>, vector<4x128xf32>
    %188 = vector.extract_strided_slice %24 {offsets = [0, 0], sizes = [1, 128], strides = [1, 1]} : vector<1x160xf32> to vector<1x128xf32>
    %189 = vector.broadcast %188 : vector<1x128xf32> to vector<4x128xf32>
    %190 = arith.mulf %187, %189 : vector<4x128xf32>
    %c0_151 = arith.constant 0 : index
    %c20_152 = arith.constant 20 : index
    %191 = vector.load %arg7[%c0_151, %c20_152] : memref<4x36xbf16, #tpu.memory_space<vmem>>, vector<4x4xbf16>
    %192 = arith.truncf %190 : vector<4x128xf32> to vector<4x128xbf16>
    %cst_153 = arith.constant dense<0.000000e+00> : vector<4x128xf32>
    %193 = tpu.matmul %191, %192, %cst_153 {dimension_numbers = #tpu.dot_dimension_numbers<[1], [0], [0], [1], [0, 0, 1, 1], [], []>} : vector<4x4xbf16>, vector<4x128xbf16>, vector<4x128xf32> -> vector<4x128xf32>
    %c0_154 = arith.constant 0 : index
    %c0_155 = arith.constant 0 : index
    %c0_156 = arith.constant 0 : index
    %194 = vector.load %arg9[%c0_154, %c0_155, %c0_156] : memref<1x4x128xf32, #tpu.memory_space<vmem>>, vector<1x4x128xf32>
    %195 = vector.shape_cast %194 : vector<1x4x128xf32> to vector<4x128xf32>
    %196 = arith.addf %195, %193 : vector<4x128xf32>
    %c0_157 = arith.constant 0 : index
    %c0_158 = arith.constant 0 : index
    %c0_159 = arith.constant 0 : index
    %197 = vector.load %arg9[%c0_157, %c0_158, %c0_159] : memref<1x4x128xf32, #tpu.memory_space<vmem>>, vector<1x4x128xf32>
    %198 = vector.shape_cast %197 : vector<1x4x128xf32> to vector<4x128xf32>
    %199 = vector.shape_cast %196 : vector<4x128xf32> to vector<1x4x128xf32>
    tpu.vector_store %arg9[%c0_157, %c0_158, %c0_159], %199 {strides = array<i32>} : memref<1x4x128xf32, #tpu.memory_space<vmem>>, vector<1x4x128xf32>,
    %c0_160 = arith.constant 0 : index
    %c47_161 = arith.constant 47 : index
    %200 = vector.load %arg11[%c0_160, %c47_161] : memref<4x192xf32, #tpu.memory_space<vmem>>, vector<4x128xf32>
    %201 = vector.extract_strided_slice %20 {offsets = [0, 0], sizes = [1, 128], strides = [1, 1]} : vector<1x160xf32> to vector<1x128xf32>
    %202 = vector.broadcast %201 : vector<1x128xf32> to vector<4x128xf32>
    %203 = arith.mulf %200, %202 : vector<4x128xf32>
    %c0_162 = arith.constant 0 : index
    %c24_163 = arith.constant 24 : index
    %204 = vector.load %arg7[%c0_162, %c24_163] : memref<4x36xbf16, #tpu.memory_space<vmem>>, vector<4x4xbf16>
    %205 = arith.truncf %203 : vector<4x128xf32> to vector<4x128xbf16>
    %cst_164 = arith.constant dense<0.000000e+00> : vector<4x128xf32>
    %206 = tpu.matmul %204, %205, %cst_164 {dimension_numbers = #tpu.dot_dimension_numbers<[1], [0], [0], [1], [0, 0, 1, 1], [], []>} : vector<4x4xbf16>, vector<4x128xbf16>, vector<4x128xf32> -> vector<4x128xf32>
    %c0_165 = arith.constant 0 : index
    %c0_166 = arith.constant 0 : index
    %c0_167 = arith.constant 0 : index
    %207 = vector.load %arg9[%c0_165, %c0_166, %c0_167] : memref<1x4x128xf32, #tpu.memory_space<vmem>>, vector<1x4x128xf32>
    %208 = vector.shape_cast %207 : vector<1x4x128xf32> to vector<4x128xf32>
    %209 = arith.addf %208, %206 : vector<4x128xf32>
    %c0_168 = arith.constant 0 : index
    %c0_169 = arith.constant 0 : index
    %c0_170 = arith.constant 0 : index
    %210 = vector.load %arg9[%c0_168, %c0_169, %c0_170] : memref<1x4x128xf32, #tpu.memory_space<vmem>>, vector<1x4x128xf32>
    %211 = vector.shape_cast %210 : vector<1x4x128xf32> to vector<4x128xf32>
    %212 = vector.shape_cast %209 : vector<4x128xf32> to vector<1x4x128xf32>
    tpu.vector_store %arg9[%c0_168, %c0_169, %c0_170], %212 {strides = array<i32>} : memref<1x4x128xf32, #tpu.memory_space<vmem>>, vector<1x4x128xf32>,
    %c0_171 = arith.constant 0 : index
    %c48_172 = arith.constant 48 : index
    %213 = vector.load %arg11[%c0_171, %c48_172] : memref<4x192xf32, #tpu.memory_space<vmem>>, vector<4x128xf32>
    %c0_173 = arith.constant 0 : index
    %c28_174 = arith.constant 28 : index
    %214 = vector.load %arg7[%c0_173, %c28_174] : memref<4x36xbf16, #tpu.memory_space<vmem>>, vector<4x4xbf16>
    %215 = arith.truncf %213 : vector<4x128xf32> to vector<4x128xbf16>
    %cst_175 = arith.constant dense<0.000000e+00> : vector<4x128xf32>
    %216 = tpu.matmul %214, %215, %cst_175 {dimension_numbers = #tpu.dot_dimension_numbers<[1], [0], [0], [1], [0, 0, 1, 1], [], []>} : vector<4x4xbf16>, vector<4x128xbf16>, vector<4x128xf32> -> vector<4x128xf32>
    %c0_176 = arith.constant 0 : index
    %c0_177 = arith.constant 0 : index
    %c0_178 = arith.constant 0 : index
    %217 = vector.load %arg9[%c0_176, %c0_177, %c0_178] : memref<1x4x128xf32, #tpu.memory_space<vmem>>, vector<1x4x128xf32>
    %218 = vector.shape_cast %217 : vector<1x4x128xf32> to vector<4x128xf32>
    %219 = arith.addf %218, %216 : vector<4x128xf32>
    %c0_179 = arith.constant 0 : index
    %c0_180 = arith.constant 0 : index
    %c0_181 = arith.constant 0 : index
    %220 = vector.load %arg9[%c0_179, %c0_180, %c0_181] : memref<1x4x128xf32, #tpu.memory_space<vmem>>, vector<1x4x128xf32>
    %221 = vector.shape_cast %220 : vector<1x4x128xf32> to vector<4x128xf32>
    %222 = vector.shape_cast %219 : vector<4x128xf32> to vector<1x4x128xf32>
    tpu.vector_store %arg9[%c0_179, %c0_180, %c0_181], %222 {strides = array<i32>} : memref<1x4x128xf32, #tpu.memory_space<vmem>>, vector<1x4x128xf32>,
    %c0_182 = arith.constant 0 : index
    %c49_183 = arith.constant 49 : index
    %223 = vector.load %arg11[%c0_182, %c49_183] : memref<4x192xf32, #tpu.memory_space<vmem>>, vector<4x128xf32>
    %224 = vector.extract_strided_slice %24 {offsets = [0, 0], sizes = [1, 128], strides = [1, 1]} : vector<1x160xf32> to vector<1x128xf32>
    %225 = vector.broadcast %224 : vector<1x128xf32> to vector<4x128xf32>
    %226 = arith.mulf %223, %225 : vector<4x128xf32>
    %c0_184 = arith.constant 0 : index
    %c32_185 = arith.constant 32 : index
    %227 = vector.load %arg7[%c0_184, %c32_185] : memref<4x36xbf16, #tpu.memory_space<vmem>>, vector<4x4xbf16>
    %228 = arith.truncf %226 : vector<4x128xf32> to vector<4x128xbf16>
    %cst_186 = arith.constant dense<0.000000e+00> : vector<4x128xf32>
    %229 = tpu.matmul %227, %228, %cst_186 {dimension_numbers = #tpu.dot_dimension_numbers<[1], [0], [0], [1], [0, 0, 1, 1], [], []>} : vector<4x4xbf16>, vector<4x128xbf16>, vector<4x128xf32> -> vector<4x128xf32>
    %c0_187 = arith.constant 0 : index
    %c0_188 = arith.constant 0 : index
    %c0_189 = arith.constant 0 : index
    %230 = vector.load %arg9[%c0_187, %c0_188, %c0_189] : memref<1x4x128xf32, #tpu.memory_space<vmem>>, vector<1x4x128xf32>
    %231 = vector.shape_cast %230 : vector<1x4x128xf32> to vector<4x128xf32>
    %232 = arith.addf %231, %229 : vector<4x128xf32>
    %c0_190 = arith.constant 0 : index
    %c0_191 = arith.constant 0 : index
    %c0_192 = arith.constant 0 : index
    %233 = vector.load %arg9[%c0_190, %c0_191, %c0_192] : memref<1x4x128xf32, #tpu.memory_space<vmem>>, vector<1x4x128xf32>
    %234 = vector.shape_cast %233 : vector<1x4x128xf32> to vector<4x128xf32>
    %235 = vector.shape_cast %232 : vector<4x128xf32> to vector<1x4x128xf32>
    tpu.vector_store %arg9[%c0_190, %c0_191, %c0_192], %235 {strides = array<i32>} : memref<1x4x128xf32, #tpu.memory_space<vmem>>, vector<1x4x128xf32>,
    %c0_193 = arith.constant 0 : index
    %c0_194 = arith.constant 0 : index
    %c0_195 = arith.constant 0 : index
    %236 = vector.load %arg9[%c0_193, %c0_194, %c0_195] : memref<1x4x128xf32, #tpu.memory_space<vmem>>, vector<1x4x128xf32>
    %237 = vector.shape_cast %236 : vector<1x4x128xf32> to vector<4x128xf32>
    %c0_196 = arith.constant 0 : index
    %c0_197 = arith.constant 0 : index
    %238 = vector.load %arg8[%c0_196, %c0_197] : memref<4x1xf32, #tpu.memory_space<vmem>>, vector<4x1xf32>
    %239 = vector.broadcast %238 : vector<4x1xf32> to vector<4x128xf32>
    %240 = arith.addf %237, %239 : vector<4x128xf32>
    %c0_198 = arith.constant 0 : index
    %c0_199 = arith.constant 0 : index
    %c0_200 = arith.constant 0 : index
    %241 = vector.load %arg2[%c0_198, %c0_199, %c0_200] : memref<1x4x128xf32, #tpu.memory_space<vmem>>, vector<1x4x128xf32>
    %242 = vector.shape_cast %241 : vector<1x4x128xf32> to vector<4x128xf32>
    %243 = arith.addf %240, %242 : vector<4x128xf32>
    %c0_201 = arith.constant 0 : index
    %c0_202 = arith.constant 0 : index
    %c0_203 = arith.constant 0 : index
    %244 = vector.load %arg9[%c0_201, %c0_202, %c0_203] : memref<1x4x128xf32, #tpu.memory_space<vmem>>, vector<1x4x128xf32>
    %245 = vector.shape_cast %244 : vector<1x4x128xf32> to vector<4x128xf32>
    %246 = vector.shape_cast %243 : vector<4x128xf32> to vector<1x4x128xf32>
    tpu.vector_store %arg9[%c0_201, %c0_202, %c0_203], %246 {strides = array<i32>} : memref<1x4x128xf32, #tpu.memory_space<vmem>>, vector<1x4x128xf32>,
    return
  }
  func.func @transform_0(%arg0: i32, %arg1: i32) -> (i32, i32, i32) {
    %c0_i32 = arith.constant 0 : i32
    %c0_i32_0 = arith.constant 0 : i32
    return %arg0, %c0_i32, %arg1 : i32, i32, i32
  }
  func.func @transform_1(%arg0: i32, %arg1: i32) -> (i32, i32, i32) {
    %c1_i32 = arith.constant 1 : i32
    %0 = arith.muli %arg1, %c1_i32 : i32
    %c1_i32_0 = arith.constant 1 : i32
    %1 = arith.subi %0, %c1_i32_0 : i32
    %c0_i32 = arith.constant 0 : i32
    %2 = arith.maxsi %1, %c0_i32 : i32
    %c0_i32_1 = arith.constant 0 : i32
    %c0_i32_2 = arith.constant 0 : i32
    return %arg0, %c0_i32_1, %2 : i32, i32, i32
  }
  func.func @transform_2(%arg0: i32, %arg1: i32) -> (i32, i32, i32) {
    %c1_i32 = arith.constant 1 : i32
    %0 = arith.addi %arg1, %c1_i32 : i32
    %c1_i32_0 = arith.constant 1 : i32
    %1 = arith.muli %0, %c1_i32_0 : i32
    %c1_i32_1 = arith.constant 1 : i32
    %2 = arith.minsi %1, %c1_i32_1 : i32
    %c0_i32 = arith.constant 0 : i32
    %c0_i32_2 = arith.constant 0 : i32
    return %arg0, %c0_i32, %2 : i32, i32, i32
  }
  func.func @transform_3(%arg0: i32, %arg1: i32) -> (i32, i32) {
    %c0_i32 = arith.constant 0 : i32
    %c0_i32_0 = arith.constant 0 : i32
    %c0_i32_1 = arith.constant 0 : i32
    return %c0_i32, %c0_i32_0 : i32, i32
  }
  func.func @transform_4(%arg0: i32, %arg1: i32) -> (i32, i32) {
    %c0_i32 = arith.constant 0 : i32
    %c0_i32_0 = arith.constant 0 : i32
    %c0_i32_1 = arith.constant 0 : i32
    return %c0_i32, %c0_i32_0 : i32, i32
  }
  func.func @transform_5(%arg0: i32, %arg1: i32) -> (i32, i32) {
    %c0_i32 = arith.constant 0 : i32
    %c0_i32_0 = arith.constant 0 : i32
    %c0_i32_1 = arith.constant 0 : i32
    return %c0_i32, %c0_i32_0 : i32, i32
  }
  func.func @transform_6(%arg0: i32, %arg1: i32) -> (i32, i32) {
    %c0_i32 = arith.constant 0 : i32
    %c0_i32_0 = arith.constant 0 : i32
    %c0_i32_1 = arith.constant 0 : i32
    return %c0_i32, %c0_i32_0 : i32, i32
  }
  func.func @transform_7(%arg0: i32, %arg1: i32) -> (i32, i32, i32) {
    %c0_i32 = arith.constant 0 : i32
    %c0_i32_0 = arith.constant 0 : i32
    return %arg0, %c0_i32, %arg1 : i32, i32, i32
  }
}

</mosaic_0001>

<llo_original>
// kernel: tpu_custom_call.1
$region0: #{tpu_custom_call.1}
  #allocation0 [shape = 'u32[]', space=smem, size = 0x4, offset = 0x4, fixed_abs, tag = 'smem constant byte address 0x4 - core index']
  #allocation1 [shape = 'u32[144,128]{1,0:T(1,128)}', space=vmem, size = 0x12000, scoped, tag = 'internal scratch']
  #allocation2 [shape = 'f32[4,224]{1,0:T(4,128)}', space=vmem, size = 0x1000, scoped, tag = 'scratch operand']
  #allocation3 [shape = 'f32[4,192]{1,0:T(4,128)}', space=vmem, size = 0x1000, scoped, tag = 'scratch operand']
  %s0 = inlined_call_operand.hbm [shape: f32[2,4,256], index: 0, kind: input, shape index: {}]
  %s1 = inlined_call_operand.hbm [shape: f32[2,4,256], index: 1, kind: input, shape index: {}]
  %s2 = inlined_call_operand.hbm [shape: f32[2,4,256], index: 2, kind: input, shape index: {}]
  %s3 = inlined_call_operand.vmem [shape: bf16[4,36], index: 3, kind: input, shape index: {}]
  %s4 = inlined_call_operand.vmem [shape: f32[4,1], index: 4, kind: input, shape index: {}]
  %s5 = inlined_call_operand.vmem [shape: bf16[4,36], index: 5, kind: input, shape index: {}]
  %s6 = inlined_call_operand.vmem [shape: f32[4,1], index: 6, kind: input, shape index: {}]
  %s7 = inlined_call_operand.hbm [shape: f32[2,4,256], index: 7, kind: output, shape index: {}]
  %s8 = sld [smem:[#allocation0]]
  $region97: #{tpu_custom_call.1} parent=0
    _
  %s10 = ssub.s32 1, %s8
  %s11 = scalar_select 0, %s10, %s8
  $region1: #{tpu_custom_call.1} parent=0
    #allocation4 [shape = 'u8[4096]{0}', space=vmem, size = 0x1000, scoped, tag = 'input window, operand 0']
    #allocation5 [shape = 's32[2]{0}', space=sflag, size = 0x8, scoped, tag = 'scoped memory for tpu_custom_call.1']
    #allocation6 [shape = 's32[2]{0}', space=sflag, size = 0x8, scoped, tag = 'scoped memory for tpu_custom_call.1']
    #allocation7 [shape = 'u8[4096]{0}', space=vmem, size = 0x1000, scoped, tag = 'input window, operand 1']
    #allocation8 [shape = 's32[2]{0}', space=sflag, size = 0x8, scoped, tag = 'scoped memory for tpu_custom_call.1']
    #allocation9 [shape = 'u8[4096]{0}', space=vmem, size = 0x1000, scoped, tag = 'input window, operand 2']
    #allocation10 [shape = 'u8[4096]{0}', space=vmem, size = 0x1000, scoped, tag = 'output window, operand 0']
    %12 = vsyncpa [#allocation5], 0
    %s13 = scalar_lea.sflag [#allocation5], 1
    %14 = vsyncpa %s13, 0
    %15 = vsyncpa [#allocation8], 0
    %s16 = scalar_lea.sflag [#allocation8], 1
    %17 = vsyncpa %s16, 0
    %18 = vsyncpa [#allocation6], 0
    %s19 = scalar_lea.sflag [#allocation6], 1
    %20 = vsyncpa %s19, 0
    loop: start=0, step=1, limit=6
    $region2: #{tpu_custom_call.1} parent=1 // loop_pre_header
      _
    $region3: #{tpu_custom_call.1} parent=1 // loop_header
      %s22 = sphi 0, %s26
      %p23 = scmp.ge.s32.totalorder %s22, 6
      %s29 = sphi 0, %s41
      %s30 = sphi 0, %s37
      %s31 = sphi 0, %s29
      %s32 = sphi 0, %s30
      %s33 = sphi 0, %s31
      %s34 = sphi 0, %s32
      %s46 = sphi 0, %s48
      %s49 = sphi 0, %s46
      %s50 = sphi 0, %s49
      %s66 = sphi 0, %s50
      %s80 = sphi 0, %s82
      %s83 = sphi 0, %s80
      %s84 = sphi 0, %s83
      %s100 = sphi 0, %s84
      %s114 = sphi 0, %s116
      %s117 = sphi 0, %s114
      %s118 = sphi 0, %s117
      %s134 = sphi 0, %s118
      %s138 = sphi 0, %s138
      %s140 = sphi 0, %s138
      %s141 = sphi 0, %s140
      %s155 = sphi 0, %s141
      %s159 = sphi 0, %s159
      %s161 = sphi 0, %s159
      %s162 = sphi 0, %s161
      %s176 = sphi 0, %s162
      %s180 = sphi 0, %s180
      %s182 = sphi 0, %s180
      %s183 = sphi 0, %s182
      %s197 = sphi 0, %s183
      %s201 = sphi 0, %s201
      %s203 = sphi 0, %s201
      %s204 = sphi 0, %s203
      %s218 = sphi 0, %s204
      %s226 = sphi 0, %s228
      %s229 = sphi 0, %s226
      %s230 = sphi 0, %s229
      %s246 = sphi 0, %s230
    $region4: #{tpu_custom_call.1} parent=1 // loop_header_branch
      %25 = sbr.rel (%p23) target = $region8
    $region5: #{tpu_custom_call.1} parent=1 // loop_body
      %s27 = ssub.s32 %s22, 1
      %s28 = ssub.s32 %s22, 2
      %s35 = sadd.s32 1, %s30
      %p36 = scmp.ge.s32.totalorder %s35, 2
      %s37 = scalar_select %p36, 0, %s35
      %s38 = sadd.s32 1, %s29
      %s39 = scalar_select %p36, %s38, %s29
      %p40 = scmp.ge.s32.totalorder %s39, 2
      %s41 = scalar_select %p40, 0, %s39
      %s42 = ssub.s32 %s29, %s41
      %s43 = ssub.s32 %s30, %s37
      %s44 = sor.u32 %s42, %s43
      %p45 = scmp.eq.s32.totalorder %s44, 0
      %s47 = sadd.s32 %s46, 1
      %s48 = scalar_select %p45, %s46, %s47
      %p51 = pneg %p45
      %p52 = scmp.eq.s32.totalorder %s22, 3
      %p53 = por %p51, %p52
      %p54 = scmp.ne.s32.totalorder %s46, %s49
      %p55 = scmp.eq.s32.totalorder %s22, 0
      %p56 = por %p54, %p55
      %p57 = scmp.ne.s32.totalorder %s46, %s49
      %p58 = scmp.eq.s32.totalorder %s27, 3
      %p59 = por %p57, %p58
      %p60 = scmp.ne.s32.totalorder %s49, %s50
      %p61 = scmp.eq.s32.totalorder %s27, 0
      %p62 = por %p60, %p61
      %p63 = scmp.ne.s32.totalorder %s49, %s50
      %p64 = scmp.eq.s32.totalorder %s28, 3
      %p65 = por %p63, %p64
      %p67 = scmp.ne.s32.totalorder %s50, %s66
      %p68 = scmp.eq.s32.totalorder %s28, 0
      %p69 = por %p67, %p68
      %s70 = ssub.s32 %s30, 1
      %p71 = scmp.gt.s32.totalorder %s70, 0
      %s72 = scalar_select %p71, %s70, 0
      %s73 = ssub.s32 %s37, 1
      %p74 = scmp.gt.s32.totalorder %s73, 0
      %s75 = scalar_select %p74, %s73, 0
      %s76 = ssub.s32 %s29, %s41
      %s77 = ssub.s32 %s72, %s75
      %s78 = sor.u32 %s76, %s77
      %p79 = scmp.eq.s32.totalorder %s78, 0
      %s81 = sadd.s32 %s80, 1
      %s82 = scalar_select %p79, %s80, %s81
      %p85 = pneg %p79
      %p86 = scmp.eq.s32.totalorder %s22, 3
      %p87 = por %p85, %p86
      %p88 = scmp.ne.s32.totalorder %s80, %s83
      %p89 = scmp.eq.s32.totalorder %s22, 0
      %p90 = por %p88, %p89
      %p91 = scmp.ne.s32.totalorder %s80, %s83
      %p92 = scmp.eq.s32.totalorder %s27, 3
      %p93 = por %p91, %p92
      %p94 = scmp.ne.s32.totalorder %s83, %s84
      %p95 = scmp.eq.s32.totalorder %s27, 0
      %p96 = por %p94, %p95
      %p97 = scmp.ne.s32.totalorder %s83, %s84
      %p98 = scmp.eq.s32.totalorder %s28, 3
      %p99 = por %p97, %p98
      %p101 = scmp.ne.s32.totalorder %s84, %s100
      %p102 = scmp.eq.s32.totalorder %s28, 0
      %p103 = por %p101, %p102
      %s104 = sadd.s32 %s30, 1
      %p105 = scmp.lt.s32.totalorder %s104, 1
      %s106 = scalar_select %p105, %s104, 1
      %s107 = sadd.s32 %s37, 1
      %p108 = scmp.lt.s32.totalorder %s107, 1
      %s109 = scalar_select %p108, %s107, 1
      %s110 = ssub.s32 %s29, %s41
      %s111 = ssub.s32 %s106, %s109
      %s112 = sor.u32 %s110, %s111
      %p113 = scmp.eq.s32.totalorder %s112, 0
      %s115 = sadd.s32 %s114, 1
      %s116 = scalar_select %p113, %s114, %s115
      %p119 = pneg %p113
      %p120 = scmp.eq.s32.totalorder %s22, 3
      %p121 = por %p119, %p120
      %p122 = scmp.ne.s32.totalorder %s114, %s117
      %p123 = scmp.eq.s32.totalorder %s22, 0
      %p124 = por %p122, %p123
      %p125 = scmp.ne.s32.totalorder %s114, %s117
      %p126 = scmp.eq.s32.totalorder %s27, 3
      %p127 = por %p125, %p126
      %p128 = scmp.ne.s32.totalorder %s117, %s118
      %p129 = scmp.eq.s32.totalorder %s27, 0
      %p130 = por %p128, %p129
      %p131 = scmp.ne.s32.totalorder %s117, %s118
      %p132 = scmp.eq.s32.totalorder %s28, 3
      %p133 = por %p131, %p132
      %p135 = scmp.ne.s32.totalorder %s118, %s134
      %p136 = scmp.eq.s32.totalorder %s28, 0
      %p137 = por %p135, %p136
      %s139 = sadd.s32 %s138, 1
      %p142 = scmp.eq.s32.totalorder %s22, 3
      %p143 = scmp.ne.s32.totalorder %s138, %s140
      %p144 = scmp.eq.s32.totalorder %s22, 0
      %p145 = por %p143, %p144
      %p146 = scmp.ne.s32.totalorder %s138, %s140
      %p147 = scmp.eq.s32.totalorder %s27, 3
      %p148 = por %p146, %p147
      %p149 = scmp.ne.s32.totalorder %s140, %s141
      %p150 = scmp.eq.s32.totalorder %s27, 0
      %p151 = por %p149, %p150
      %p152 = scmp.ne.s32.totalorder %s140, %s141
      %p153 = scmp.eq.s32.totalorder %s28, 3
      %p154 = por %p152, %p153
      %p156 = scmp.ne.s32.totalorder %s141, %s155
      %p157 = scmp.eq.s32.totalorder %s28, 0
      %p158 = por %p156, %p157
      %s160 = sadd.s32 %s159, 1
      %p163 = scmp.eq.s32.totalorder %s22, 3
      %p164 = scmp.ne.s32.totalorder %s159, %s161
      %p165 = scmp.eq.s32.totalorder %s22, 0
      %p166 = por %p164, %p165
      %p167 = scmp.ne.s32.totalorder %s159, %s161
      %p168 = scmp.eq.s32.totalorder %s27, 3
      %p169 = por %p167, %p168
      %p170 = scmp.ne.s32.totalorder %s161, %s162
      %p171 = scmp.eq.s32.totalorder %s27, 0
      %p172 = por %p170, %p171
      %p173 = scmp.ne.s32.totalorder %s161, %s162
      %p174 = scmp.eq.s32.totalorder %s28, 3
      %p175 = por %p173, %p174
      %p177 = scmp.ne.s32.totalorder %s162, %s176
      %p178 = scmp.eq.s32.totalorder %s28, 0
      %p179 = por %p177, %p178
      %s181 = sadd.s32 %s180, 1
      %p184 = scmp.eq.s32.totalorder %s22, 3
      %p185 = scmp.ne.s32.totalorder %s180, %s182
      %p186 = scmp.eq.s32.totalorder %s22, 0
      %p187 = por %p185, %p186
      %p188 = scmp.ne.s32.totalorder %s180, %s182
      %p189 = scmp.eq.s32.totalorder %s27, 3
      %p190 = por %p188, %p189
      %p191 = scmp.ne.s32.totalorder %s182, %s183
      %p192 = scmp.eq.s32.totalorder %s27, 0
      %p193 = por %p191, %p192
      %p194 = scmp.ne.s32.totalorder %s182, %s183
      %p195 = scmp.eq.s32.totalorder %s28, 3
      %p196 = por %p194, %p195
      %p198 = scmp.ne.s32.totalorder %s183, %s197
      %p199 = scmp.eq.s32.totalorder %s28, 0
      %p200 = por %p198, %p199
      %s202 = sadd.s32 %s201, 1
      %p205 = scmp.eq.s32.totalorder %s22, 3
      %p206 = scmp.ne.s32.totalorder %s201, %s203
      %p207 = scmp.eq.s32.totalorder %s22, 0
      %p208 = por %p206, %p207
      %p209 = scmp.ne.s32.totalorder %s201, %s203
      %p210 = scmp.eq.s32.totalorder %s27, 3
      %p211 = por %p209, %p210
      %p212 = scmp.ne.s32.totalorder %s203, %s204
      %p213 = scmp.eq.s32.totalorder %s27, 0
      %p214 = por %p212, %p213
      %p215 = scmp.ne.s32.totalorder %s203, %s204
      %p216 = scmp.eq.s32.totalorder %s28, 3
      %p217 = por %p215, %p216
      %p219 = scmp.ne.s32.totalorder %s204, %s218
      %p220 = scmp.eq.s32.totalorder %s28, 0
      %p221 = por %p219, %p220
      %s222 = ssub.s32 %s29, %s41
      %s223 = ssub.s32 %s30, %s37
      %s224 = sor.u32 %s222, %s223
      %p225 = scmp.eq.s32.totalorder %s224, 0
      %s227 = sadd.s32 %s226, 1
      %s228 = scalar_select %p225, %s226, %s227
      %p231 = pneg %p225
      %p232 = scmp.eq.s32.totalorder %s22, 3
      %p233 = por %p231, %p232
      %p234 = scmp.ne.s32.totalorder %s226, %s229
      %p235 = scmp.eq.s32.totalorder %s22, 0
      %p236 = por %p234, %p235
      %p237 = scmp.ne.s32.totalorder %s226, %s229
      %p238 = scmp.eq.s32.totalorder %s27, 3
      %p239 = por %p237, %p238
      %p240 = scmp.ne.s32.totalorder %s229, %s230
      %p241 = scmp.eq.s32.totalorder %s27, 0
      %p242 = por %p240, %p241
      %p243 = scmp.ne.s32.totalorder %s229, %s230
      %p244 = scmp.eq.s32.totalorder %s28, 3
      %p245 = por %p243, %p244
      %p247 = scmp.ne.s32.totalorder %s230, %s246
      %p248 = scmp.eq.s32.totalorder %s28, 0
      %p249 = por %p247, %p248
      %p250 = scmp.le.s32.totalorder 1, %s22
      %p251 = scmp.lt.s32.totalorder %s22, 5
      %p252 = pnand %p250, %p251
      %p253 = pneg %p252
      // Predicated region
      $region9: #{tpu_custom_call.1} parent=5 // pred_check
        _
      $region10: #{tpu_custom_call.1} parent=5 // pred_check_branch
        %255 = sbr.rel (%p252) target = $region12
      $region11: #{tpu_custom_call.1} parent=5 // pred_region
        %s256 = ssub.s32 %s22, 1
        // Predicated region
        $region13: #{tpu_custom_call.1} parent=11 // pred_check
          %p257 = pneg %p151
        $region14: #{tpu_custom_call.1} parent=11 // pred_check_branch
          %259 = sbr.rel (%p257) target = $region16
        $region15: #{tpu_custom_call.1} parent=11 // pred_region
          _
        $region16: #{tpu_custom_call.1} parent=11 // pred_fallthru
          _
        // Predicated region
        $region17: #{tpu_custom_call.1} parent=11 // pred_check
          %p260 = pneg %p172
        $region18: #{tpu_custom_call.1} parent=11 // pred_check_branch
          %262 = sbr.rel (%p260) target = $region20
        $region19: #{tpu_custom_call.1} parent=11 // pred_region
          _
        $region20: #{tpu_custom_call.1} parent=11 // pred_fallthru
          _
        // Predicated region
        $region21: #{tpu_custom_call.1} parent=11 // pred_check
          %p263 = pneg %p193
        $region22: #{tpu_custom_call.1} parent=11 // pred_check_branch
          %265 = sbr.rel (%p263) target = $region24
        $region23: #{tpu_custom_call.1} parent=11 // pred_region
          _
        $region24: #{tpu_custom_call.1} parent=11 // pred_fallthru
          _
        // Predicated region
        $region25: #{tpu_custom_call.1} parent=11 // pred_check
          %p266 = pneg %p214
        $region26: #{tpu_custom_call.1} parent=11 // pred_check_branch
          %268 = sbr.rel (%p266) target = $region28
        $region27: #{tpu_custom_call.1} parent=11 // pred_region
          _
        $region28: #{tpu_custom_call.1} parent=11 // pred_fallthru
          _
      $region12: #{tpu_custom_call.1} parent=5 // pred_fallthru
        _
      %p269 = scmp.lt.s32.totalorder %s22, 4
      // Predicated region
      $region29: #{tpu_custom_call.1} parent=5 // pred_check
        %p270 = pneg %p269
      $region30: #{tpu_custom_call.1} parent=5 // pred_check_branch
        %272 = sbr.rel (%p270) target = $region32
      $region31: #{tpu_custom_call.1} parent=5 // pred_region
        // Predicated region
        $region33: #{tpu_custom_call.1} parent=31 // pred_check
          %p273 = pneg %p56
        $region34: #{tpu_custom_call.1} parent=31 // pred_check_branch
          %275 = sbr.rel (%p273) target = $region36
        $region35: #{tpu_custom_call.1} parent=31 // pred_region
          %s276 = sand.u32 %s46, 1
          %s277 = scalar_lea.sflag [#allocation5], %s276
          %s278 = sand.u32 %s46, 1
          %s279 = smul.addr %s278, 4
          %s280 = scalar_lea.vmem [#allocation4], %s279
          %s282 = ssub.s32 64, 64
          %283 = vsyncadd %s277, %s282
          %s284 = smul.addr %s29, 2
          %s285 = sadd.s32 %s30, %s284
          %s286 = smul.addr %s285, 64
          %s287 = scalar_lea.hbm %s0, %s286
          %s289 = sshll.u32 %s280, 4
          %s290 = int_to_ptr.vmem [resolvable:$true] %s289
          %292 = dma.hbm_to_vmem [thread:$0]  %s287, 64, %s290, %s277
        $region36: #{tpu_custom_call.1} parent=31 // pred_fallthru
          _
        // Predicated region
        $region37: #{tpu_custom_call.1} parent=31 // pred_check
          %p293 = pneg %p90
        $region38: #{tpu_custom_call.1} parent=31 // pred_check_branch
          %295 = sbr.rel (%p293) target = $region40
        $region39: #{tpu_custom_call.1} parent=31 // pred_region
          %s296 = sand.u32 %s22, 1
          %s297 = scalar_lea.sflag [#allocation8], %s296
          %s298 = sand.u32 %s80, 1
          %s299 = smul.addr %s298, 4
          %s300 = scalar_lea.vmem [#allocation7], %s299
          %s301 = ssub.s32 %s30, 1
          %p302 = scmp.gt.s32.totalorder %s301, 0
          %s303 = scalar_select %p302, %s301, 0
          %s305 = ssub.s32 64, 64
          %306 = vsyncadd %s297, %s305
          %s307 = smul.addr %s29, 2
          %s308 = sadd.s32 %s303, %s307
          %s309 = smul.addr %s308, 64
          %s310 = scalar_lea.hbm %s1, %s309
          %s312 = sshll.u32 %s300, 4
          %s313 = int_to_ptr.vmem [resolvable:$true] %s312
          %315 = dma.hbm_to_vmem [thread:$0]  %s310, 64, %s313, %s297
        $region40: #{tpu_custom_call.1} parent=31 // pred_fallthru
          _
        // Predicated region
        $region41: #{tpu_custom_call.1} parent=31 // pred_check
          %p316 = pneg %p124
        $region42: #{tpu_custom_call.1} parent=31 // pred_check_branch
          %318 = sbr.rel (%p316) target = $region44
        $region43: #{tpu_custom_call.1} parent=31 // pred_region
          %s319 = sand.u32 %s22, 1
          %s320 = scalar_lea.sflag [#allocation8], %s319
          %s321 = sand.u32 %s114, 1
          %s322 = smul.addr %s321, 4
          %s323 = scalar_lea.vmem [#allocation9], %s322
          %s324 = sadd.s32 %s30, 1
          %p325 = scmp.lt.s32.totalorder %s324, 1
          %s326 = scalar_select %p325, %s324, 1
          %s328 = ssub.s32 64, 64
          %329 = vsyncadd %s320, %s328
          %s330 = smul.addr %s29, 2
          %s331 = sadd.s32 %s326, %s330
          %s332 = smul.addr %s331, 64
          %s333 = scalar_lea.hbm %s2, %s332
          %s335 = sshll.u32 %s323, 4
          %s336 = int_to_ptr.vmem [resolvable:$true] %s335
          %338 = dma.hbm_to_vmem [thread:$0]  %s333, 64, %s336, %s320
        $region44: #{tpu_custom_call.1} parent=31 // pred_fallthru
          _
      $region32: #{tpu_custom_call.1} parent=5 // pred_fallthru
        _
      %p339 = scmp.le.s32.totalorder 1, %s22
      %p340 = scmp.lt.s32.totalorder %s22, 5
      %p341 = pnand %p339, %p340
      %p342 = pneg %p341
      // Predicated region
      $region45: #{tpu_custom_call.1} parent=5 // pred_check
        _
      $region46: #{tpu_custom_call.1} parent=5 // pred_check_branch
        %344 = sbr.rel (%p341) target = $region48
      $region47: #{tpu_custom_call.1} parent=5 // pred_region
        %s345 = ssub.s32 %s22, 1
        %s346 = sand.u32 %s49, 1
        %s347 = scalar_lea.sflag [#allocation5], %s346
        %s348 = sand.u32 %s49, 1
        %s349 = smul.addr %s348, 4
        %s350 = scalar_lea.vmem [#allocation4], %s349
        // Predicated region
        $region49: #{tpu_custom_call.1} parent=47 // pred_check
          %p351 = pneg %p62
        $region50: #{tpu_custom_call.1} parent=47 // pred_check_branch
          %353 = sbr.rel (%p351) target = $region52
        $region51: #{tpu_custom_call.1} parent=47 // pred_region
          %354 = dma.done %s347, 64
        $region52: #{tpu_custom_call.1} parent=47 // pred_fallthru
          _
        %s355 = sand.u32 %s27, 1
        %s356 = scalar_lea.sflag [#allocation8], %s355
        %s357 = sand.u32 %s83, 1
        %s358 = smul.addr %s357, 4
        %s359 = scalar_lea.vmem [#allocation7], %s358
        // Predicated region
        $region53: #{tpu_custom_call.1} parent=47 // pred_check
          %p360 = pneg %p96
        $region54: #{tpu_custom_call.1} parent=47 // pred_check_branch
          %362 = sbr.rel (%p360) target = $region56
        $region55: #{tpu_custom_call.1} parent=47 // pred_region
          %363 = dma.done %s356, 64
        $region56: #{tpu_custom_call.1} parent=47 // pred_fallthru
          _
        %s364 = sand.u32 %s27, 1
        %s365 = scalar_lea.sflag [#allocation8], %s364
        %s366 = sand.u32 %s117, 1
        %s367 = smul.addr %s366, 4
        %s368 = scalar_lea.vmem [#allocation9], %s367
        // Predicated region
        $region57: #{tpu_custom_call.1} parent=47 // pred_check
          %p369 = pneg %p130
        $region58: #{tpu_custom_call.1} parent=47 // pred_check_branch
          %371 = sbr.rel (%p369) target = $region60
        $region59: #{tpu_custom_call.1} parent=47 // pred_region
          %372 = dma.done %s365, 64
        $region60: #{tpu_custom_call.1} parent=47 // pred_fallthru
          _
        %s373 = sand.u32 %s49, 1
        %s374 = scalar_lea.sflag [#allocation5], %s373
        %s375 = sand.u32 %s49, 1
        %s376 = smul.addr %s375, 4
        %s377 = scalar_lea.vmem [#allocation4], %s376
        %p378 = pneg %p62
        %p379 = pneg %p59
        %s380 = sand.u32 %s27, 1
        %s381 = scalar_lea.sflag [#allocation8], %s380
        %s382 = sand.u32 %s83, 1
        %s383 = smul.addr %s382, 4
        %s384 = scalar_lea.vmem [#allocation7], %s383
        %p385 = pneg %p96
        %p386 = pneg %p93
        %s387 = sand.u32 %s27, 1
        %s388 = scalar_lea.sflag [#allocation8], %s387
        %s389 = sand.u32 %s117, 1
        %s390 = smul.addr %s389, 4
        %s391 = scalar_lea.vmem [#allocation9], %s390
        %p392 = pneg %p130
        %p393 = pneg %p127
        %p394 = pneg %p151
        %p395 = pneg %p148
        %p396 = pneg %p172
        %p397 = pneg %p169
        %p398 = pneg %p193
        %p399 = pneg %p190
        %p400 = pneg %p214
        %p401 = pneg %p211
        %p402 = pneg %p242
        %p403 = pneg %p239
        %s404 = sand.u32 %s229, 1
        %s405 = scalar_lea.sflag [#allocation6], %s404
        %s406 = sand.u32 %s229, 1
        %s407 = smul.addr %s406, 4
        %s408 = scalar_lea.vmem [#allocation10], %s407
        %s409 = ssub.s32 %s32, 1
        %p410 = scmp.gt.s32.totalorder %s409, 0
        %s411 = scalar_select %p410, %s409, 0
        %s412 = sadd.s32 %s32, 1
        %p413 = scmp.lt.s32.totalorder %s412, 1
        %s414 = scalar_select %p413, %s412, 1
        %v416 = vlaneseq
        %v417 = vand.u32 %v416, 127
        %v418 = vadd.s32 %v417, 128
        %vm419 = vcmp.lt.s32.totalorder %v417, 0
        %v420 = vsub.s32 0, %v417
        %v421 = vsel %vm419, %v420, %v417
        %v422 = vshrl.u32 %v421, 4
        %v423 = vand.u32 %v421, 15
        %v424 = vsub.s32 0, %v423
        %v425 = vsel %vm419, %v424, %v423
        %vm426 = vcmp.lt.s32.totalorder %v418, 0
        %v427 = vsub.s32 0, %v418
        %v428 = vsel %vm426, %v427, %v418
        %v429 = vshrl.u32 %v428, 4
        %v430 = vand.u32 %v428, 15
        %v431 = vsub.s32 0, %v430
        %v432 = vsel %vm426, %v431, %v430
        %vm433 = vcmp.ne.s32.totalorder %v425, 0
        %vm434 = vcmp.ne.s32.totalorder %v432, 0
        %vm435 = vcmp.lt.s32.totalorder %v425, 0
        %vm436 = vcmp.lt.s32.totalorder %v432, 0
        %vm437 = vmand %vm435, %vm433
        %vm438 = vmand %vm436, %vm434
        %v439 = vadd.s32 %v425, 16
        %v440 = vadd.s32 %v432, 16
        %v441 = vsel %vm437, %v439, %v425
        %v442 = vsel %vm438, %v440, %v432
        %vm443 = vcmp.ne.s32.totalorder %v441, 0
        %vm444 = vcmp.ne.s32.totalorder %v442, 0
        %v445 = vsel %vm443, 1, 0
        %v446 = vsel %vm444, 1, 0
        %v447 = vcvt.s32.f32 %v445
        %v448 = vcvt.s32.f32 %v446
        %vm449 = vcmp.ne.s32.totalorder %v441, 15
        %vm450 = vcmp.ne.s32.totalorder %v442, 15
        %v451 = vsel %vm449, 1, 0
        %v452 = vsel %vm450, 1, 0
        %v453 = vcvt.s32.f32 %v451
        %v454 = vcvt.s32.f32 %v452
        %vm455 = vcmask 125952
        %456 = vst.msk [vmem:[#allocation2] sm:$0xf] %vm455, 0.0
        %vm457 = vcmask 781952
        %458 = vst.msk [vmem:[#allocation2 + $0x4] sm:$0xf] %vm457, 0.0
        %p459 = scmp.gt.s32.totalorder %s32, 0
        // Predicated region
        $region61: #{tpu_custom_call.1} parent=47 // pred_check
          %p460 = pneg %p459
        $region62: #{tpu_custom_call.1} parent=47 // pred_check_branch
          %462 = sbr.rel (%p460) target = $region64
        $region63: #{tpu_custom_call.1} parent=47 // pred_region
          %v463 = vld [vmem:[%s359] sm:$0xf]
          %465 = vrot.lane.b32.xlu0 %v463, 48
          %v466 = vpop.permute.xlu0 %465
          %vm468 = vcmask 388224
          %469 = vst.msk [vmem:[#allocation2] sm:$0xf] %vm468, %v466
        $region64: #{tpu_custom_call.1} parent=47 // pred_fallthru
          _
        %p470 = scmp.eq.s32.totalorder %s32, 0
        // Predicated region
        $region65: #{tpu_custom_call.1} parent=47 // pred_check
          %p471 = pneg %p470
        $region66: #{tpu_custom_call.1} parent=47 // pred_check_branch
          %473 = sbr.rel (%p471) target = $region68
        $region67: #{tpu_custom_call.1} parent=47 // pred_region
          %vm474 = vcmask 388224
          %475 = vst.msk [vmem:[#allocation2] sm:$0xf] %vm474, 0.0
        $region68: #{tpu_custom_call.1} parent=47 // pred_fallthru
          _
        %v476 = vld [vmem:[%s350] sm:$0xf]
        %478 = vrot.lane.b32.xlu0 %v476, 48
        %v479 = vpop.permute.xlu0 %478
        %v480 = vrot.slane %v479, 4
        %vm481 = vcmask 392192
        %v482 = vsel %vm481, %v480, %v479
        %vm484 = vcmask 1043840
        %vm485 = vcmask 392196
        %vm486 = vmor %vm485, %vm484
        %487 = vst.msk [vmem:[#allocation2] sm:$0xff] %vm486, %v482
        %p488 = scmp.lt.s32.totalorder %s32, 1
        // Predicated region
        $region69: #{tpu_custom_call.1} parent=47 // pred_check
          %p489 = pneg %p488
        $region70: #{tpu_custom_call.1} parent=47 // pred_check_branch
          %491 = sbr.rel (%p489) target = $region72
        $region71: #{tpu_custom_call.1} parent=47 // pred_region
          %v492 = vld [vmem:[%s368] sm:$0xf]
          %494 = vrot.lane.b32.xlu0 %v492, 48
          %v495 = vpop.permute.xlu0 %494
          %vm497 = vcmask 650624
          %498 = vst.msk [vmem:[#allocation2 + $0x4] sm:$0xf] %vm497, %v495
        $region72: #{tpu_custom_call.1} parent=47 // pred_fallthru
          _
        %p499 = scmp.eq.s32.totalorder %s32, 1
        // Predicated region
        $region73: #{tpu_custom_call.1} parent=47 // pred_check
          %p500 = pneg %p499
        $region74: #{tpu_custom_call.1} parent=47 // pred_check_branch
          %502 = sbr.rel (%p500) target = $region76
        $region75: #{tpu_custom_call.1} parent=47 // pred_region
          %vm503 = vcmask 650624
          %504 = vst.msk [vmem:[#allocation2 + $0x4] sm:$0xf] %vm503, 0.0
        $region76: #{tpu_custom_call.1} parent=47 // pred_fallthru
          _
        %505 = vst.msk [vmem:[#allocation3] sm:$0xf] %vm455, 0.0
        %vm506 = vcmask 519552
        %507 = vst.msk [vmem:[#allocation3 + $0x4] sm:$0xf] %vm506, 0.0
        %v508 = vld [vmem:[#allocation2] sm:$0xff]
        %v511 = vcombine.low %v447, %v448
        %512 = vrot.lane.b32.xlu0 %v511, 15
        %v513 = vpop.permute.xlu0 %512
        %v514 = vrot.slane %v513, 4
        %vm515 = vcmask 121856
        %v516 = vsel %vm515, %v514, %v513
        %v518 = vmul.f32 %v508, %v516
        %v519 = vld [vmem:[%s3] sm:$0x3]
        %v521 = vcombine.high %v518, %v518
        %v523 = vpack.c.bf16 %v518, %v518
        %v524 = vpack.c.bf16 %v521, %v521
        %527 = vrot.lane.b32.xlu0 %v523, 113
        %v528 = vpop.permute.xlu0 %527
        %529 = vrot.lane.b32.xlu0 %v524, 113
        %v530 = vpop.permute.xlu0 %529
        %vm531 = vcmask 924672
        %v532 = vsel %vm531, %v528, %v530
        %vm533 = vcmask 31744
        %v535 = vsel %vm533, %v519, 0
        %vm537 = vcmask 1041408
        %v539 = vsel %vm537, %v532, 0
        %v542 = vsel %vm537, %v530, 0
        %544 = vmatprep.subr.bf16.mxu0 0
        %545 = vmatpush1.bf16.msra.mxu0 0
        %546 = vmatprep.subr.bf16.mxu0 0
        %547 = vmatpush1.bf16.msra.mxu0 0
        %548 = vmatprep.subr.bf16.mxu0 0
        %549 = vmatpush1.bf16.msra.mxu0 0
        %550 = vmatprep.subr.bf16.mxu0 0
        %551 = vmatpush1.bf16.msra.mxu0 0
        %552 = vmatprep.subr.bf16.mxu0 0
        %553 = vmatpush1.bf16.msra.mxu0 0
        %554 = vmatprep.subr.bf16.mxu0 0
        %555 = vmatpush1.bf16.msra.mxu0 0
        %556 = vmatprep.subr.bf16.mxu0 0
        %557 = vmatpush1.bf16.msra.mxu0 0
        %558 = vmatprep.subr.bf16.mxu0 %v542
        %559 = vmatpush1.bf16.msra.mxu0 %v539
        %560 = vmatprep.subr.bf16.mxu0 0
        %561 = vmatpush2.bf16.msra.mxu0 0
        %562 = vmatprep.subr.bf16.mxu0 0
        %563 = vmatpush2.bf16.msra.mxu0 0
        %564 = vmatprep.subr.bf16.mxu0 0
        %565 = vmatpush2.bf16.msra.mxu0 0
        %566 = vmatprep.subr.bf16.mxu0 0
        %567 = vmatpush2.bf16.msra.mxu0 0
        %568 = vmatprep.subr.bf16.mxu0 0
        %569 = vmatpush2.bf16.msra.mxu0 0
        %570 = vmatprep.subr.bf16.mxu0 0
        %571 = vmatpush2.bf16.msra.mxu0 0
        %572 = vmatprep.subr.bf16.mxu0 0
        %573 = vmatpush2.bf16.msra.mxu0 0
        %574 = vmatprep.subr.bf16.mxu0 0
        %575 = vmatpush2.bf16.msra.mxu0 0
        %576 = vmatprep.mubr.bf16.mxu0 0
        %577 = vmatmul.mubr.bf16.gmra.mxu0 %v535
        %v578 = vpop.f32.mrf.mxu0
        %v579 = vadd.f32 0.0, %v578
        %v580 = vpop.f32.mrf.mxu0
        %v581 = vadd.f32 0.0, %v580
        %v582 = vpop.f32.mrf.mxu0
        %v583 = vpop.f32.mrf.mxu0
        %584 = vdwg.mxu0
        %v587 = vcombine.low %v579, %v581
        %588 = vrot.lane.b32.xlu0 %v587, 16
        %v589 = vpop.permute.xlu0 %588
        %v590 = vrot.slane %v589, 4
        %vm591 = vcmask 130048
        %v592 = vsel %vm591, %v590, %v589
        %vm594 = vcmask 1043584
        %vm595 = vmor %vm485, %vm594
        %596 = vst.msk [vmem:[#allocation3] sm:$0xff] %vm595, %v592
        %v597 = vld [vmem:[#allocation2] sm:$0xff]
        %v598 = vld [vmem:[%s3] sm:$0x3]
        %v600 = vcombine.high %v597, %v597
        %v602 = vpack.c.bf16 %v597, %v597
        %v603 = vpack.c.bf16 %v600, %v600
        %v606 = vunpack.c.l.s4 1983009808
        %v607 = vunpack.c.0.s8 %v606
        %v608 = vlaneseq
        %v609 = vshrl.u32 %v608, 7
        %v610 = vsub.s32 %v607, %v609
        %v611 = vrot.slane %v598, %v610
        %612 = vrot.lane.b32.xlu0 %v611, 124
        %v613 = vpop.permute.xlu0 %612
        %616 = vrot.lane.b32.xlu0 %v602, 112
        %v617 = vpop.permute.xlu0 %616
        %618 = vrot.lane.b32.xlu0 %v603, 112
        %v619 = vpop.permute.xlu0 %618
        %vm620 = vcmask 916480
        %v621 = vsel %vm620, %v617, %v619
        %v623 = vsel %vm533, %v613, 0
        %v626 = vsel %vm537, %v621, 0
        %v629 = vsel %vm537, %v619, 0
        %631 = vmatprep.subr.bf16.mxu0 0
        %632 = vmatpush1.bf16.msra.mxu0 0
        %633 = vmatprep.subr.bf16.mxu0 0
        %634 = vmatpush1.bf16.msra.mxu0 0
        %635 = vmatprep.subr.bf16.mxu0 0
        %636 = vmatpush1.bf16.msra.mxu0 0
        %637 = vmatprep.subr.bf16.mxu0 0
        %638 = vmatpush1.bf16.msra.mxu0 0
        %639 = vmatprep.subr.bf16.mxu0 0
        %640 = vmatpush1.bf16.msra.mxu0 0
        %641 = vmatprep.subr.bf16.mxu0 0
        %642 = vmatpush1.bf16.msra.mxu0 0
        %643 = vmatprep.subr.bf16.mxu0 0
        %644 = vmatpush1.bf16.msra.mxu0 0
        %645 = vmatprep.subr.bf16.mxu0 %v629
        %646 = vmatpush1.bf16.msra.mxu0 %v626
        %647 = vmatprep.subr.bf16.mxu0 0
        %648 = vmatpush2.bf16.msra.mxu0 0
        %649 = vmatprep.subr.bf16.mxu0 0
        %650 = vmatpush2.bf16.msra.mxu0 0
        %651 = vmatprep.subr.bf16.mxu0 0
        %652 = vmatpush2.bf16.msra.mxu0 0
        %653 = vmatprep.subr.bf16.mxu0 0
        %654 = vmatpush2.bf16.msra.mxu0 0
        %655 = vmatprep.subr.bf16.mxu0 0
        %656 = vmatpush2.bf16.msra.mxu0 0
        %657 = vmatprep.subr.bf16.mxu0 0
        %658 = vmatpush2.bf16.msra.mxu0 0
        %659 = vmatprep.subr.bf16.mxu0 0
        %660 = vmatpush2.bf16.msra.mxu0 0
        %661 = vmatprep.subr.bf16.mxu0 0
        %662 = vmatpush2.bf16.msra.mxu0 0
        %663 = vmatprep.mubr.bf16.mxu0 0
        %664 = vmatmul.mubr.bf16.gmra.mxu0 %v623
        %v665 = vpop.f32.mrf.mxu0
        %v666 = vadd.f32 0.0, %v665
        %v667 = vpop.f32.mrf.mxu0
        %v668 = vadd.f32 0.0, %v667
        %v669 = vpop.f32.mrf.mxu0
        %v670 = vpop.f32.mrf.mxu0
        %671 = vdwg.mxu0
        %v672 = vld [vmem:[#allocation3] sm:$0xff]
        %v675 = vcombine.low %v666, %v668
        %676 = vrot.lane.b32.xlu0 %v675, 16
        %v677 = vpop.permute.xlu0 %676
        %v678 = vrot.slane %v677, 4
        %v679 = vsel %vm591, %v678, %v677
        %v681 = vadd.f32 %v672, %v679
        %682 = vst.msk [vmem:[#allocation3] sm:$0xff] %vm595, %v681
        %v683 = vld [vmem:[#allocation2] sm:$0xff]
        %v686 = vcombine.low %v453, %v454
        %687 = vrot.lane.b32.xlu0 %v686, 17
        %v688 = vpop.permute.xlu0 %687
        %v689 = vrot.slane %v688, 4
        %vm690 = vcmask 138240
        %v691 = vsel %vm690, %v689, %v688
        %v693 = vmul.f32 %v683, %v691
        %v694 = vld [vmem:[%s3] sm:$0x3]
        %v696 = vcombine.high %v693, %v693
        %v698 = vpack.c.bf16 %v693, %v693
        %v699 = vpack.c.bf16 %v696, %v696
        %v702 = vunpack.c.l.s4 1983009808
        %v703 = vunpack.c.0.s8 %v702
        %v704 = vlaneseq
        %v705 = vshrl.u32 %v704, 7
        %v706 = vsub.s32 %v703, %v705
        %v707 = vrot.slane %v694, %v706
        %708 = vrot.lane.b32.xlu0 %v707, 120
        %v709 = vpop.permute.xlu0 %708
        %712 = vrot.lane.b32.xlu0 %v698, 111
        %v713 = vpop.permute.xlu0 %712
        %714 = vrot.lane.b32.xlu0 %v699, 111
        %v715 = vpop.permute.xlu0 %714
        %vm716 = vcmask 908288
        %v717 = vsel %vm716, %v713, %v715
        %v719 = vsel %vm533, %v709, 0
        %v722 = vsel %vm537, %v717, 0
        %v725 = vsel %vm537, %v715, 0
        %727 = vmatprep.subr.bf16.mxu0 0
        %728 = vmatpush1.bf16.msra.mxu0 0
        %729 = vmatprep.subr.bf16.mxu0 0
        %730 = vmatpush1.bf16.msra.mxu0 0
        %731 = vmatprep.subr.bf16.mxu0 0
        %732 = vmatpush1.bf16.msra.mxu0 0
        %733 = vmatprep.subr.bf16.mxu0 0
        %734 = vmatpush1.bf16.msra.mxu0 0
        %735 = vmatprep.subr.bf16.mxu0 0
        %736 = vmatpush1.bf16.msra.mxu0 0
        %737 = vmatprep.subr.bf16.mxu0 0
        %738 = vmatpush1.bf16.msra.mxu0 0
        %739 = vmatprep.subr.bf16.mxu0 0
        %740 = vmatpush1.bf16.msra.mxu0 0
        %741 = vmatprep.subr.bf16.mxu0 %v725
        %742 = vmatpush1.bf16.msra.mxu0 %v722
        %743 = vmatprep.subr.bf16.mxu0 0
        %744 = vmatpush2.bf16.msra.mxu0 0
        %745 = vmatprep.subr.bf16.mxu0 0
        %746 = vmatpush2.bf16.msra.mxu0 0
        %747 = vmatprep.subr.bf16.mxu0 0
        %748 = vmatpush2.bf16.msra.mxu0 0
        %749 = vmatprep.subr.bf16.mxu0 0
        %750 = vmatpush2.bf16.msra.mxu0 0
        %751 = vmatprep.subr.bf16.mxu0 0
        %752 = vmatpush2.bf16.msra.mxu0 0
        %753 = vmatprep.subr.bf16.mxu0 0
        %754 = vmatpush2.bf16.msra.mxu0 0
        %755 = vmatprep.subr.bf16.mxu0 0
        %756 = vmatpush2.bf16.msra.mxu0 0
        %757 = vmatprep.subr.bf16.mxu0 0
        %758 = vmatpush2.bf16.msra.mxu0 0
        %759 = vmatprep.mubr.bf16.mxu0 0
        %760 = vmatmul.mubr.bf16.gmra.mxu0 %v719
        %v761 = vpop.f32.mrf.mxu0
        %v762 = vadd.f32 0.0, %v761
        %v763 = vpop.f32.mrf.mxu0
        %v764 = vadd.f32 0.0, %v763
        %v765 = vpop.f32.mrf.mxu0
        %v766 = vpop.f32.mrf.mxu0
        %767 = vdwg.mxu0
        %v768 = vld [vmem:[#allocation3] sm:$0xff]
        %v771 = vcombine.low %v762, %v764
        %772 = vrot.lane.b32.xlu0 %v771, 16
        %v773 = vpop.permute.xlu0 %772
        %v774 = vrot.slane %v773, 4
        %v775 = vsel %vm591, %v774, %v773
        %v777 = vadd.f32 %v768, %v775
        %778 = vst.msk [vmem:[#allocation3] sm:$0xff] %vm595, %v777
        %v779 = vld [vmem:[#allocation2] sm:$0xff]
        %780 = vrot.lane.b32.xlu0 %v511, 31
        %v781 = vpop.permute.xlu0 %780
        %v782 = vrot.slane %v781, 4
        %vm783 = vcmask 252928
        %v784 = vsel %vm783, %v782, %v781
        %v786 = vmul.f32 %v779, %v784
        %v787 = vld [vmem:[%s3] sm:$0x3]
        %v789 = vcombine.high %v786, %v786
        %v791 = vpack.c.bf16 %v786, %v786
        %v792 = vpack.c.bf16 %v789, %v789
        %v795 = vunpack.c.l.s4 1983009808
        %v796 = vunpack.c.0.s8 %v795
        %v797 = vlaneseq
        %v798 = vshrl.u32 %v797, 7
        %v799 = vsub.s32 %v796, %v798
        %v800 = vrot.slane %v787, %v799
        %801 = vrot.lane.b32.xlu0 %v800, 116
        %v802 = vpop.permute.xlu0 %801
        %805 = vrot.lane.b32.xlu0 %v791, 97
        %v806 = vpop.permute.xlu0 %805
        %807 = vrot.lane.b32.xlu0 %v792, 97
        %v808 = vpop.permute.xlu0 %807
        %vm809 = vcmask 793600
        %v810 = vsel %vm809, %v806, %v808
        %v812 = vsel %vm533, %v802, 0
        %v815 = vsel %vm537, %v810, 0
        %v818 = vsel %vm537, %v808, 0
        %820 = vmatprep.subr.bf16.mxu0 0
        %821 = vmatpush1.bf16.msra.mxu0 0
        %822 = vmatprep.subr.bf16.mxu0 0
        %823 = vmatpush1.bf16.msra.mxu0 0
        %824 = vmatprep.subr.bf16.mxu0 0
        %825 = vmatpush1.bf16.msra.mxu0 0
        %826 = vmatprep.subr.bf16.mxu0 0
        %827 = vmatpush1.bf16.msra.mxu0 0
        %828 = vmatprep.subr.bf16.mxu0 0
        %829 = vmatpush1.bf16.msra.mxu0 0
        %830 = vmatprep.subr.bf16.mxu0 0
        %831 = vmatpush1.bf16.msra.mxu0 0
        %832 = vmatprep.subr.bf16.mxu0 0
        %833 = vmatpush1.bf16.msra.mxu0 0
        %834 = vmatprep.subr.bf16.mxu0 %v818
        %835 = vmatpush1.bf16.msra.mxu0 %v815
        %836 = vmatprep.subr.bf16.mxu0 0
        %837 = vmatpush2.bf16.msra.mxu0 0
        %838 = vmatprep.subr.bf16.mxu0 0
        %839 = vmatpush2.bf16.msra.mxu0 0
        %840 = vmatprep.subr.bf16.mxu0 0
        %841 = vmatpush2.bf16.msra.mxu0 0
        %842 = vmatprep.subr.bf16.mxu0 0
        %843 = vmatpush2.bf16.msra.mxu0 0
        %844 = vmatprep.subr.bf16.mxu0 0
        %845 = vmatpush2.bf16.msra.mxu0 0
        %846 = vmatprep.subr.bf16.mxu0 0
        %847 = vmatpush2.bf16.msra.mxu0 0
        %848 = vmatprep.subr.bf16.mxu0 0
        %849 = vmatpush2.bf16.msra.mxu0 0
        %850 = vmatprep.subr.bf16.mxu0 0
        %851 = vmatpush2.bf16.msra.mxu0 0
        %852 = vmatprep.mubr.bf16.mxu0 0
        %853 = vmatmul.mubr.bf16.gmra.mxu0 %v812
        %v854 = vpop.f32.mrf.mxu0
        %v855 = vadd.f32 0.0, %v854
        %v856 = vpop.f32.mrf.mxu0
        %v857 = vadd.f32 0.0, %v856
        %v858 = vpop.f32.mrf.mxu0
        %v859 = vpop.f32.mrf.mxu0
        %860 = vdwg.mxu0
        %v861 = vld [vmem:[#allocation3] sm:$0xff]
        %v864 = vcombine.low %v855, %v857
        %865 = vrot.lane.b32.xlu0 %v864, 16
        %v866 = vpop.permute.xlu0 %865
        %v867 = vrot.slane %v866, 4
        %v868 = vsel %vm591, %v867, %v866
        %v870 = vadd.f32 %v861, %v868
        %871 = vst.msk [vmem:[#allocation3] sm:$0xff] %vm595, %v870
        %v872 = vld [vmem:[#allocation2] sm:$0xff]
        %v873 = vld [vmem:[%s3] sm:$0x3]
        %v875 = vcombine.high %v872, %v872
        %v877 = vpack.c.bf16 %v872, %v872
        %v878 = vpack.c.bf16 %v875, %v875
        %v881 = vunpack.c.l.s4 1983009808
        %v882 = vunpack.c.0.s8 %v881
        %v883 = vlaneseq
        %v884 = vshrl.u32 %v883, 7
        %v885 = vsub.s32 %v882, %v884
        %v886 = vrot.slane %v873, %v885
        %887 = vrot.lane.b32.xlu0 %v886, 112
        %v888 = vpop.permute.xlu0 %887
        %891 = vrot.lane.b32.xlu0 %v877, 96
        %v892 = vpop.permute.xlu0 %891
        %893 = vrot.lane.b32.xlu0 %v878, 96
        %v894 = vpop.permute.xlu0 %893
        %vm895 = vcmask 785408
        %v896 = vsel %vm895, %v892, %v894
        %v898 = vsel %vm533, %v888, 0
        %v901 = vsel %vm537, %v896, 0
        %v904 = vsel %vm537, %v894, 0
        %906 = vmatprep.subr.bf16.mxu0 0
        %907 = vmatpush1.bf16.msra.mxu0 0
        %908 = vmatprep.subr.bf16.mxu0 0
        %909 = vmatpush1.bf16.msra.mxu0 0
        %910 = vmatprep.subr.bf16.mxu0 0
        %911 = vmatpush1.bf16.msra.mxu0 0
        %912 = vmatprep.subr.bf16.mxu0 0
        %913 = vmatpush1.bf16.msra.mxu0 0
        %914 = vmatprep.subr.bf16.mxu0 0
        %915 = vmatpush1.bf16.msra.mxu0 0
        %916 = vmatprep.subr.bf16.mxu0 0
        %917 = vmatpush1.bf16.msra.mxu0 0
        %918 = vmatprep.subr.bf16.mxu0 0
        %919 = vmatpush1.bf16.msra.mxu0 0
        %920 = vmatprep.subr.bf16.mxu0 %v904
        %921 = vmatpush1.bf16.msra.mxu0 %v901
        %922 = vmatprep.subr.bf16.mxu0 0
        %923 = vmatpush2.bf16.msra.mxu0 0
        %924 = vmatprep.subr.bf16.mxu0 0
        %925 = vmatpush2.bf16.msra.mxu0 0
        %926 = vmatprep.subr.bf16.mxu0 0
        %927 = vmatpush2.bf16.msra.mxu0 0
        %928 = vmatprep.subr.bf16.mxu0 0
        %929 = vmatpush2.bf16.msra.mxu0 0
        %930 = vmatprep.subr.bf16.mxu0 0
        %931 = vmatpush2.bf16.msra.mxu0 0
        %932 = vmatprep.subr.bf16.mxu0 0
        %933 = vmatpush2.bf16.msra.mxu0 0
        %934 = vmatprep.subr.bf16.mxu0 0
        %935 = vmatpush2.bf16.msra.mxu0 0
        %936 = vmatprep.subr.bf16.mxu0 0
        %937 = vmatpush2.bf16.msra.mxu0 0
        %938 = vmatprep.mubr.bf16.mxu0 0
        %939 = vmatmul.mubr.bf16.gmra.mxu0 %v898
        %v940 = vpop.f32.mrf.mxu0
        %v941 = vadd.f32 0.0, %v940
        %v942 = vpop.f32.mrf.mxu0
        %v943 = vadd.f32 0.0, %v942
        %v944 = vpop.f32.mrf.mxu0
        %v945 = vpop.f32.mrf.mxu0
        %946 = vdwg.mxu0
        %v947 = vld [vmem:[#allocation3] sm:$0xff]
        %v950 = vcombine.low %v941, %v943
        %951 = vrot.lane.b32.xlu0 %v950, 16
        %v952 = vpop.permute.xlu0 %951
        %v953 = vrot.slane %v952, 4
        %v954 = vsel %vm591, %v953, %v952
        %v956 = vadd.f32 %v947, %v954
        %957 = vst.msk [vmem:[#allocation3] sm:$0xff] %vm595, %v956
        %v958 = vld [vmem:[#allocation2] sm:$0xff]
        %959 = vrot.lane.b32.xlu0 %v686, 33
        %v960 = vpop.permute.xlu0 %959
        %v961 = vrot.slane %v960, 4
        %vm962 = vcmask 269312
        %v963 = vsel %vm962, %v961, %v960
        %v965 = vmul.f32 %v958, %v963
        %v966 = vld [vmem:[%s3] sm:$0x3]
        %v968 = vcombine.high %v965, %v965
        %v970 = vpack.c.bf16 %v965, %v965
        %v971 = vpack.c.bf16 %v968, %v968
        %v974 = vunpack.c.l.s4 1983009808
        %v975 = vunpack.c.0.s8 %v974
        %v976 = vlaneseq
        %v977 = vshrl.u32 %v976, 7
        %v978 = vsub.s32 %v975, %v977
        %v979 = vrot.slane %v966, %v978
        %980 = vrot.lane.b32.xlu0 %v979, 108
        %v981 = vpop.permute.xlu0 %980
        %984 = vrot.lane.b32.xlu0 %v970, 95
        %v985 = vpop.permute.xlu0 %984
        %986 = vrot.lane.b32.xlu0 %v971, 95
        %v987 = vpop.permute.xlu0 %986
        %vm988 = vcmask 777216
        %v989 = vsel %vm988, %v985, %v987
        %v991 = vsel %vm533, %v981, 0
        %v994 = vsel %vm537, %v989, 0
        %v997 = vsel %vm537, %v987, 0
        %999 = vmatprep.subr.bf16.mxu0 0
        %1000 = vmatpush1.bf16.msra.mxu0 0
        %1001 = vmatprep.subr.bf16.mxu0 0
        %1002 = vmatpush1.bf16.msra.mxu0 0
        %1003 = vmatprep.subr.bf16.mxu0 0
        %1004 = vmatpush1.bf16.msra.mxu0 0
        %1005 = vmatprep.subr.bf16.mxu0 0
        %1006 = vmatpush1.bf16.msra.mxu0 0
        %1007 = vmatprep.subr.bf16.mxu0 0
        %1008 = vmatpush1.bf16.msra.mxu0 0
        %1009 = vmatprep.subr.bf16.mxu0 0
        %1010 = vmatpush1.bf16.msra.mxu0 0
        %1011 = vmatprep.subr.bf16.mxu0 0
        %1012 = vmatpush1.bf16.msra.mxu0 0
        %1013 = vmatprep.subr.bf16.mxu0 %v997
        %1014 = vmatpush1.bf16.msra.mxu0 %v994
        %1015 = vmatprep.subr.bf16.mxu0 0
        %1016 = vmatpush2.bf16.msra.mxu0 0
        %1017 = vmatprep.subr.bf16.mxu0 0
        %1018 = vmatpush2.bf16.msra.mxu0 0
        %1019 = vmatprep.subr.bf16.mxu0 0
        %1020 = vmatpush2.bf16.msra.mxu0 0
        %1021 = vmatprep.subr.bf16.mxu0 0
        %1022 = vmatpush2.bf16.msra.mxu0 0
        %1023 = vmatprep.subr.bf16.mxu0 0
        %1024 = vmatpush2.bf16.msra.mxu0 0
        %1025 = vmatprep.subr.bf16.mxu0 0
        %1026 = vmatpush2.bf16.msra.mxu0 0
        %1027 = vmatprep.subr.bf16.mxu0 0
        %1028 = vmatpush2.bf16.msra.mxu0 0
        %1029 = vmatprep.subr.bf16.mxu0 0
        %1030 = vmatpush2.bf16.msra.mxu0 0
        %1031 = vmatprep.mubr.bf16.mxu0 0
        %1032 = vmatmul.mubr.bf16.gmra.mxu0 %v991
        %v1033 = vpop.f32.mrf.mxu0
        %v1034 = vadd.f32 0.0, %v1033
        %v1035 = vpop.f32.mrf.mxu0
        %v1036 = vadd.f32 0.0, %v1035
        %v1037 = vpop.f32.mrf.mxu0
        %v1038 = vpop.f32.mrf.mxu0
        %1039 = vdwg.mxu0
        %v1040 = vld [vmem:[#allocation3] sm:$0xff]
        %v1043 = vcombine.low %v1034, %v1036
        %1044 = vrot.lane.b32.xlu0 %v1043, 16
        %v1045 = vpop.permute.xlu0 %1044
        %v1046 = vrot.slane %v1045, 4
        %v1047 = vsel %vm591, %v1046, %v1045
        %v1049 = vadd.f32 %v1040, %v1047
        %1050 = vst.msk [vmem:[#allocation3] sm:$0xff] %vm595, %v1049
        %v1051 = vld [vmem:[#allocation2] sm:$0xff]
        %1052 = vrot.lane.b32.xlu0 %v511, 47
        %v1053 = vpop.permute.xlu0 %1052
        %v1054 = vrot.slane %v1053, 4
        %vm1055 = vcmask 384000
        %v1056 = vsel %vm1055, %v1054, %v1053
        %v1058 = vmul.f32 %v1051, %v1056
        %v1059 = vld [vmem:[%s3] sm:$0x3]
        %v1061 = vcombine.high %v1058, %v1058
        %v1063 = vpack.c.bf16 %v1058, %v1058
        %v1064 = vpack.c.bf16 %v1061, %v1061
        %v1067 = vunpack.c.l.s4 1983009808
        %v1068 = vunpack.c.0.s8 %v1067
        %v1069 = vlaneseq
        %v1070 = vshrl.u32 %v1069, 7
        %v1071 = vsub.s32 %v1068, %v1070
        %v1072 = vrot.slane %v1059, %v1071
        %1073 = vrot.lane.b32.xlu0 %v1072, 104
        %v1074 = vpop.permute.xlu0 %1073
        %1077 = vrot.lane.b32.xlu0 %v1063, 81
        %v1078 = vpop.permute.xlu0 %1077
        %1079 = vrot.lane.b32.xlu0 %v1064, 81
        %v1080 = vpop.permute.xlu0 %1079
        %vm1081 = vcmask 662528
        %v1082 = vsel %vm1081, %v1078, %v1080
        %v1084 = vsel %vm533, %v1074, 0
        %v1087 = vsel %vm537, %v1082, 0
        %v1090 = vsel %vm537, %v1080, 0
        %1092 = vmatprep.subr.bf16.mxu0 0
        %1093 = vmatpush1.bf16.msra.mxu0 0
        %1094 = vmatprep.subr.bf16.mxu0 0
        %1095 = vmatpush1.bf16.msra.mxu0 0
        %1096 = vmatprep.subr.bf16.mxu0 0
        %1097 = vmatpush1.bf16.msra.mxu0 0
        %1098 = vmatprep.subr.bf16.mxu0 0
        %1099 = vmatpush1.bf16.msra.mxu0 0
        %1100 = vmatprep.subr.bf16.mxu0 0
        %1101 = vmatpush1.bf16.msra.mxu0 0
        %1102 = vmatprep.subr.bf16.mxu0 0
        %1103 = vmatpush1.bf16.msra.mxu0 0
        %1104 = vmatprep.subr.bf16.mxu0 0
        %1105 = vmatpush1.bf16.msra.mxu0 0
        %1106 = vmatprep.subr.bf16.mxu0 %v1090
        %1107 = vmatpush1.bf16.msra.mxu0 %v1087
        %1108 = vmatprep.subr.bf16.mxu0 0
        %1109 = vmatpush2.bf16.msra.mxu0 0
        %1110 = vmatprep.subr.bf16.mxu0 0
        %1111 = vmatpush2.bf16.msra.mxu0 0
        %1112 = vmatprep.subr.bf16.mxu0 0
        %1113 = vmatpush2.bf16.msra.mxu0 0
        %1114 = vmatprep.subr.bf16.mxu0 0
        %1115 = vmatpush2.bf16.msra.mxu0 0
        %1116 = vmatprep.subr.bf16.mxu0 0
        %1117 = vmatpush2.bf16.msra.mxu0 0
        %1118 = vmatprep.subr.bf16.mxu0 0
        %1119 = vmatpush2.bf16.msra.mxu0 0
        %1120 = vmatprep.subr.bf16.mxu0 0
        %1121 = vmatpush2.bf16.msra.mxu0 0
        %1122 = vmatprep.subr.bf16.mxu0 0
        %1123 = vmatpush2.bf16.msra.mxu0 0
        %1124 = vmatprep.mubr.bf16.mxu0 0
        %1125 = vmatmul.mubr.bf16.gmra.mxu0 %v1084
        %v1126 = vpop.f32.mrf.mxu0
        %v1127 = vadd.f32 0.0, %v1126
        %v1128 = vpop.f32.mrf.mxu0
        %v1129 = vadd.f32 0.0, %v1128
        %v1130 = vpop.f32.mrf.mxu0
        %v1131 = vpop.f32.mrf.mxu0
        %1132 = vdwg.mxu0
        %v1133 = vld [vmem:[#allocation3] sm:$0xff]
        %v1136 = vcombine.low %v1127, %v1129
        %1137 = vrot.lane.b32.xlu0 %v1136, 16
        %v1138 = vpop.permute.xlu0 %1137
        %v1139 = vrot.slane %v1138, 4
        %v1140 = vsel %vm591, %v1139, %v1138
        %v1142 = vadd.f32 %v1133, %v1140
        %1143 = vst.msk [vmem:[#allocation3] sm:$0xff] %vm595, %v1142
        %v1144 = vld [vmem:[#allocation2] sm:$0xff]
        %v1145 = vld [vmem:[%s3] sm:$0x3]
        %v1147 = vcombine.high %v1144, %v1144
        %v1149 = vpack.c.bf16 %v1144, %v1144
        %v1150 = vpack.c.bf16 %v1147, %v1147
        %v1153 = vunpack.c.l.s4 1983009808
        %v1154 = vunpack.c.0.s8 %v1153
        %v1155 = vlaneseq
        %v1156 = vshrl.u32 %v1155, 7
        %v1157 = vsub.s32 %v1154, %v1156
        %v1158 = vrot.slane %v1145, %v1157
        %1159 = vrot.lane.b32.xlu0 %v1158, 100
        %v1160 = vpop.permute.xlu0 %1159
        %1163 = vrot.lane.b32.xlu0 %v1149, 80
        %v1164 = vpop.permute.xlu0 %1163
        %1165 = vrot.lane.b32.xlu0 %v1150, 80
        %v1166 = vpop.permute.xlu0 %1165
        %vm1167 = vcmask 654336
        %v1168 = vsel %vm1167, %v1164, %v1166
        %v1170 = vsel %vm533, %v1160, 0
        %v1173 = vsel %vm537, %v1168, 0
        %v1176 = vsel %vm537, %v1166, 0
        %1178 = vmatprep.subr.bf16.mxu0 0
        %1179 = vmatpush1.bf16.msra.mxu0 0
        %1180 = vmatprep.subr.bf16.mxu0 0
        %1181 = vmatpush1.bf16.msra.mxu0 0
        %1182 = vmatprep.subr.bf16.mxu0 0
        %1183 = vmatpush1.bf16.msra.mxu0 0
        %1184 = vmatprep.subr.bf16.mxu0 0
        %1185 = vmatpush1.bf16.msra.mxu0 0
        %1186 = vmatprep.subr.bf16.mxu0 0
        %1187 = vmatpush1.bf16.msra.mxu0 0
        %1188 = vmatprep.subr.bf16.mxu0 0
        %1189 = vmatpush1.bf16.msra.mxu0 0
        %1190 = vmatprep.subr.bf16.mxu0 0
        %1191 = vmatpush1.bf16.msra.mxu0 0
        %1192 = vmatprep.subr.bf16.mxu0 %v1176
        %1193 = vmatpush1.bf16.msra.mxu0 %v1173
        %1194 = vmatprep.subr.bf16.mxu0 0
        %1195 = vmatpush2.bf16.msra.mxu0 0
        %1196 = vmatprep.subr.bf16.mxu0 0
        %1197 = vmatpush2.bf16.msra.mxu0 0
        %1198 = vmatprep.subr.bf16.mxu0 0
        %1199 = vmatpush2.bf16.msra.mxu0 0
        %1200 = vmatprep.subr.bf16.mxu0 0
        %1201 = vmatpush2.bf16.msra.mxu0 0
        %1202 = vmatprep.subr.bf16.mxu0 0
        %1203 = vmatpush2.bf16.msra.mxu0 0
        %1204 = vmatprep.subr.bf16.mxu0 0
        %1205 = vmatpush2.bf16.msra.mxu0 0
        %1206 = vmatprep.subr.bf16.mxu0 0
        %1207 = vmatpush2.bf16.msra.mxu0 0
        %1208 = vmatprep.subr.bf16.mxu0 0
        %1209 = vmatpush2.bf16.msra.mxu0 0
        %1210 = vmatprep.mubr.bf16.mxu0 0
        %1211 = vmatmul.mubr.bf16.gmra.mxu0 %v1170
        %v1212 = vpop.f32.mrf.mxu0
        %v1213 = vadd.f32 0.0, %v1212
        %v1214 = vpop.f32.mrf.mxu0
        %v1215 = vadd.f32 0.0, %v1214
        %v1216 = vpop.f32.mrf.mxu0
        %v1217 = vpop.f32.mrf.mxu0
        %1218 = vdwg.mxu0
        %v1219 = vld [vmem:[#allocation3] sm:$0xff]
        %v1222 = vcombine.low %v1213, %v1215
        %1223 = vrot.lane.b32.xlu0 %v1222, 16
        %v1224 = vpop.permute.xlu0 %1223
        %v1225 = vrot.slane %v1224, 4
        %v1226 = vsel %vm591, %v1225, %v1224
        %v1228 = vadd.f32 %v1219, %v1226
        %1229 = vst.msk [vmem:[#allocation3] sm:$0xff] %vm595, %v1228
        %v1230 = vld [vmem:[#allocation2] sm:$0xff]
        %1231 = vrot.lane.b32.xlu0 %v686, 49
        %v1232 = vpop.permute.xlu0 %1231
        %v1233 = vrot.slane %v1232, 4
        %vm1234 = vcmask 400384
        %v1235 = vsel %vm1234, %v1233, %v1232
        %v1237 = vmul.f32 %v1230, %v1235
        %v1238 = vld [vmem:[%s3] sm:$0x3]
        %v1240 = vcombine.high %v1237, %v1237
        %v1242 = vpack.c.bf16 %v1237, %v1237
        %v1243 = vpack.c.bf16 %v1240, %v1240
        %v1246 = vunpack.c.l.s4 1983009808
        %v1247 = vunpack.c.0.s8 %v1246
        %v1248 = vlaneseq
        %v1249 = vshrl.u32 %v1248, 7
        %v1250 = vsub.s32 %v1247, %v1249
        %v1251 = vrot.slane %v1238, %v1250
        %1252 = vrot.lane.b32.xlu0 %v1251, 96
        %v1253 = vpop.permute.xlu0 %1252
        %1256 = vrot.lane.b32.xlu0 %v1242, 79
        %v1257 = vpop.permute.xlu0 %1256
        %1258 = vrot.lane.b32.xlu0 %v1243, 79
        %v1259 = vpop.permute.xlu0 %1258
        %vm1260 = vcmask 646144
        %v1261 = vsel %vm1260, %v1257, %v1259
        %v1263 = vsel %vm533, %v1253, 0
        %v1266 = vsel %vm537, %v1261, 0
        %v1269 = vsel %vm537, %v1259, 0
        %1271 = vmatprep.subr.bf16.mxu0 0
        %1272 = vmatpush1.bf16.msra.mxu0 0
        %1273 = vmatprep.subr.bf16.mxu0 0
        %1274 = vmatpush1.bf16.msra.mxu0 0
        %1275 = vmatprep.subr.bf16.mxu0 0
        %1276 = vmatpush1.bf16.msra.mxu0 0
        %1277 = vmatprep.subr.bf16.mxu0 0
        %1278 = vmatpush1.bf16.msra.mxu0 0
        %1279 = vmatprep.subr.bf16.mxu0 0
        %1280 = vmatpush1.bf16.msra.mxu0 0
        %1281 = vmatprep.subr.bf16.mxu0 0
        %1282 = vmatpush1.bf16.msra.mxu0 0
        %1283 = vmatprep.subr.bf16.mxu0 0
        %1284 = vmatpush1.bf16.msra.mxu0 0
        %1285 = vmatprep.subr.bf16.mxu0 %v1269
        %1286 = vmatpush1.bf16.msra.mxu0 %v1266
        %1287 = vmatprep.subr.bf16.mxu0 0
        %1288 = vmatpush2.bf16.msra.mxu0 0
        %1289 = vmatprep.subr.bf16.mxu0 0
        %1290 = vmatpush2.bf16.msra.mxu0 0
        %1291 = vmatprep.subr.bf16.mxu0 0
        %1292 = vmatpush2.bf16.msra.mxu0 0
        %1293 = vmatprep.subr.bf16.mxu0 0
        %1294 = vmatpush2.bf16.msra.mxu0 0
        %1295 = vmatprep.subr.bf16.mxu0 0
        %1296 = vmatpush2.bf16.msra.mxu0 0
        %1297 = vmatprep.subr.bf16.mxu0 0
        %1298 = vmatpush2.bf16.msra.mxu0 0
        %1299 = vmatprep.subr.bf16.mxu0 0
        %1300 = vmatpush2.bf16.msra.mxu0 0
        %1301 = vmatprep.subr.bf16.mxu0 0
        %1302 = vmatpush2.bf16.msra.mxu0 0
        %1303 = vmatprep.mubr.bf16.mxu0 0
        %1304 = vmatmul.mubr.bf16.gmra.mxu0 %v1263
        %v1305 = vpop.f32.mrf.mxu0
        %v1306 = vadd.f32 0.0, %v1305
        %v1307 = vpop.f32.mrf.mxu0
        %v1308 = vadd.f32 0.0, %v1307
        %v1309 = vpop.f32.mrf.mxu0
        %v1310 = vpop.f32.mrf.mxu0
        %1311 = vdwg.mxu0
        %v1312 = vld [vmem:[#allocation3] sm:$0xff]
        %v1315 = vcombine.low %v1306, %v1308
        %1316 = vrot.lane.b32.xlu0 %v1315, 16
        %v1317 = vpop.permute.xlu0 %1316
        %v1318 = vrot.slane %v1317, 4
        %v1319 = vsel %vm591, %v1318, %v1317
        %v1321 = vadd.f32 %v1312, %v1319
        %1322 = vst.msk [vmem:[#allocation3] sm:$0xff] %vm595, %v1321
        %v1323 = vld [vmem:[#allocation3] sm:$0xff]
        %v1324 = vld [vmem:[%s4] sm:$0xf]
        %1326 = vset.pattern.permute.xlu0 0
        %1327 = vperm.xlu0 %1326, %v1324
        %v1328 = vpop.permute.xlu0 %1327
        %v1330 = vunpack.c.l.s4 839922192
        %v1331 = vunpack.c.0.s8 %v1330
        %v1332 = vlaneseq
        %v1333 = vshrl.u32 %v1332, 7
        %v1334 = vsub.s32 %v1331, %v1333
        %v1335 = vrot.slane %v1328, %v1334
        %v1337 = vadd.f32 %v1323, %v1335
        %v1338 = vmax.f32 %v1337, 0.0
        %1339 = vst.msk [vmem:[#allocation3] sm:$0xff] %vm595, %v1338
        // Predicated region
        $region77: #{tpu_custom_call.1} parent=47 // pred_check
          %p1340 = pneg %p470
        $region78: #{tpu_custom_call.1} parent=47 // pred_check_branch
          %1342 = sbr.rel (%p1340) target = $region80
        $region79: #{tpu_custom_call.1} parent=47 // pred_region
          %vm1343 = vcmask 257152
          %1344 = vst.msk [vmem:[#allocation3] sm:$0xf] %vm1343, 0.0
        $region80: #{tpu_custom_call.1} parent=47 // pred_fallthru
          _
        // Predicated region
        $region81: #{tpu_custom_call.1} parent=47 // pred_check
          %p1345 = pneg %p499
        $region82: #{tpu_custom_call.1} parent=47 // pred_check_branch
          %1347 = sbr.rel (%p1345) target = $region84
        $region83: #{tpu_custom_call.1} parent=47 // pred_region
          %vm1348 = vcmask 388352
          %1349 = vst.msk [vmem:[#allocation3 + $0x4] sm:$0xf] %vm1348, 0.0
        $region84: #{tpu_custom_call.1} parent=47 // pred_fallthru
          _
        %v1350 = vld [vmem:[#allocation3] sm:$0xff]
        %1351 = vrot.lane.b32.xlu0 %v447, 15
        %v1352 = vpop.permute.xlu0 %1351
        %v1353 = vrot.slane %v1352, 4
        %v1354 = vsel %vm515, %v1353, %v1352
        %v1356 = vmul.f32 %v1350, %v1354
        %v1357 = vld [vmem:[%s5] sm:$0x3]
        %v1359 = vcombine.high %v1356, %v1356
        %v1361 = vpack.c.bf16 %v1356, %v1356
        %v1362 = vpack.c.bf16 %v1359, %v1359
        %1365 = vrot.lane.b32.xlu0 %v1361, 113
        %v1366 = vpop.permute.xlu0 %1365
        %1367 = vrot.lane.b32.xlu0 %v1362, 113
        %v1368 = vpop.permute.xlu0 %1367
        %v1369 = vsel %vm531, %v1366, %v1368
        %v1371 = vsel %vm533, %v1357, 0
        %v1374 = vsel %vm537, %v1369, 0
        %1376 = vmatprep.subr.bf16.mxu0 0
        %1377 = vmatpush1.bf16.msra.mxu0 0
        %1378 = vmatprep.subr.bf16.mxu0 0
        %1379 = vmatpush1.bf16.msra.mxu0 0
        %1380 = vmatprep.subr.bf16.mxu0 0
        %1381 = vmatpush1.bf16.msra.mxu0 0
        %1382 = vmatprep.subr.bf16.mxu0 0
        %1383 = vmatpush1.bf16.msra.mxu0 0
        %1384 = vmatprep.subr.bf16.mxu0 0
        %1385 = vmatpush1.bf16.msra.mxu0 0
        %1386 = vmatprep.subr.bf16.mxu0 0
        %1387 = vmatpush1.bf16.msra.mxu0 0
        %1388 = vmatprep.subr.bf16.mxu0 0
        %1389 = vmatpush1.bf16.msra.mxu0 0
        %1390 = vmatprep.subr.bf16.mxu0 0
        %1391 = vmatpush1.bf16.msra.mxu0 %v1374
        %1392 = vmatprep.subr.bf16.mxu0 0
        %1393 = vmatpush2.bf16.msra.mxu0 0
        %1394 = vmatprep.subr.bf16.mxu0 0
        %1395 = vmatpush2.bf16.msra.mxu0 0
        %1396 = vmatprep.subr.bf16.mxu0 0
        %1397 = vmatpush2.bf16.msra.mxu0 0
        %1398 = vmatprep.subr.bf16.mxu0 0
        %1399 = vmatpush2.bf16.msra.mxu0 0
        %1400 = vmatprep.subr.bf16.mxu0 0
        %1401 = vmatpush2.bf16.msra.mxu0 0
        %1402 = vmatprep.subr.bf16.mxu0 0
        %1403 = vmatpush2.bf16.msra.mxu0 0
        %1404 = vmatprep.subr.bf16.mxu0 0
        %1405 = vmatpush2.bf16.msra.mxu0 0
        %1406 = vmatprep.subr.bf16.mxu0 0
        %1407 = vmatpush2.bf16.msra.mxu0 0
        %1408 = vmatprep.mubr.bf16.mxu0 0
        %1409 = vmatmul.mubr.bf16.gmra.mxu0 %v1371
        %v1410 = vpop.f32.mrf.mxu0
        %v1411 = vadd.f32 0.0, %v1410
        %v1412 = vpop.f32.mrf.mxu0
        %v1413 = vpop.f32.mrf.mxu0
        %v1414 = vpop.f32.mrf.mxu0
        %1415 = vdwg.mxu0
        %1416 = vst [vmem:[%s408] sm:$0xf] %v1411
        %v1417 = vld [vmem:[#allocation3] sm:$0xff]
        %v1418 = vld [vmem:[%s5] sm:$0x3]
        %v1420 = vcombine.high %v1417, %v1417
        %v1422 = vpack.c.bf16 %v1417, %v1417
        %v1423 = vpack.c.bf16 %v1420, %v1420
        %v1426 = vunpack.c.l.s4 1983009808
        %v1427 = vunpack.c.0.s8 %v1426
        %v1428 = vlaneseq
        %v1429 = vshrl.u32 %v1428, 7
        %v1430 = vsub.s32 %v1427, %v1429
        %v1431 = vrot.slane %v1418, %v1430
        %1432 = vrot.lane.b32.xlu0 %v1431, 124
        %v1433 = vpop.permute.xlu0 %1432
        %1436 = vrot.lane.b32.xlu0 %v1422, 112
        %v1437 = vpop.permute.xlu0 %1436
        %1438 = vrot.lane.b32.xlu0 %v1423, 112
        %v1439 = vpop.permute.xlu0 %1438
        %v1440 = vsel %vm620, %v1437, %v1439
        %v1442 = vsel %vm533, %v1433, 0
        %v1445 = vsel %vm537, %v1440, 0
        %1447 = vmatprep.subr.bf16.mxu0 0
        %1448 = vmatpush1.bf16.msra.mxu0 0
        %1449 = vmatprep.subr.bf16.mxu0 0
        %1450 = vmatpush1.bf16.msra.mxu0 0
        %1451 = vmatprep.subr.bf16.mxu0 0
        %1452 = vmatpush1.bf16.msra.mxu0 0
        %1453 = vmatprep.subr.bf16.mxu0 0
        %1454 = vmatpush1.bf16.msra.mxu0 0
        %1455 = vmatprep.subr.bf16.mxu0 0
        %1456 = vmatpush1.bf16.msra.mxu0 0
        %1457 = vmatprep.subr.bf16.mxu0 0
        %1458 = vmatpush1.bf16.msra.mxu0 0
        %1459 = vmatprep.subr.bf16.mxu0 0
        %1460 = vmatpush1.bf16.msra.mxu0 0
        %1461 = vmatprep.subr.bf16.mxu0 0
        %1462 = vmatpush1.bf16.msra.mxu0 %v1445
        %1463 = vmatprep.subr.bf16.mxu0 0
        %1464 = vmatpush2.bf16.msra.mxu0 0
        %1465 = vmatprep.subr.bf16.mxu0 0
        %1466 = vmatpush2.bf16.msra.mxu0 0
        %1467 = vmatprep.subr.bf16.mxu0 0
        %1468 = vmatpush2.bf16.msra.mxu0 0
        %1469 = vmatprep.subr.bf16.mxu0 0
        %1470 = vmatpush2.bf16.msra.mxu0 0
        %1471 = vmatprep.subr.bf16.mxu0 0
        %1472 = vmatpush2.bf16.msra.mxu0 0
        %1473 = vmatprep.subr.bf16.mxu0 0
        %1474 = vmatpush2.bf16.msra.mxu0 0
        %1475 = vmatprep.subr.bf16.mxu0 0
        %1476 = vmatpush2.bf16.msra.mxu0 0
        %1477 = vmatprep.subr.bf16.mxu0 0
        %1478 = vmatpush2.bf16.msra.mxu0 0
        %1479 = vmatprep.mubr.bf16.mxu0 0
        %1480 = vmatmul.mubr.bf16.gmra.mxu0 %v1442
        %v1481 = vpop.f32.mrf.mxu0
        %v1482 = vadd.f32 0.0, %v1481
        %v1483 = vpop.f32.mrf.mxu0
        %v1484 = vpop.f32.mrf.mxu0
        %v1485 = vpop.f32.mrf.mxu0
        %1486 = vdwg.mxu0
        %v1487 = vld [vmem:[%s408] sm:$0xf]
        %v1488 = vadd.f32 %v1487, %v1482
        %1489 = vst [vmem:[%s408] sm:$0xf] %v1488
        %v1490 = vld [vmem:[#allocation3] sm:$0xff]
        %1491 = vrot.lane.b32.xlu0 %v453, 17
        %v1492 = vpop.permute.xlu0 %1491
        %v1493 = vrot.slane %v1492, 4
        %v1494 = vsel %vm690, %v1493, %v1492
        %v1496 = vmul.f32 %v1490, %v1494
        %v1497 = vld [vmem:[%s5] sm:$0x3]
        %v1499 = vcombine.high %v1496, %v1496
        %v1501 = vpack.c.bf16 %v1496, %v1496
        %v1502 = vpack.c.bf16 %v1499, %v1499
        %v1505 = vunpack.c.l.s4 1983009808
        %v1506 = vunpack.c.0.s8 %v1505
        %v1507 = vlaneseq
        %v1508 = vshrl.u32 %v1507, 7
        %v1509 = vsub.s32 %v1506, %v1508
        %v1510 = vrot.slane %v1497, %v1509
        %1511 = vrot.lane.b32.xlu0 %v1510, 120
        %v1512 = vpop.permute.xlu0 %1511
        %1515 = vrot.lane.b32.xlu0 %v1501, 111
        %v1516 = vpop.permute.xlu0 %1515
        %1517 = vrot.lane.b32.xlu0 %v1502, 111
        %v1518 = vpop.permute.xlu0 %1517
        %v1519 = vsel %vm716, %v1516, %v1518
        %v1521 = vsel %vm533, %v1512, 0
        %v1524 = vsel %vm537, %v1519, 0
        %1526 = vmatprep.subr.bf16.mxu0 0
        %1527 = vmatpush1.bf16.msra.mxu0 0
        %1528 = vmatprep.subr.bf16.mxu0 0
        %1529 = vmatpush1.bf16.msra.mxu0 0
        %1530 = vmatprep.subr.bf16.mxu0 0
        %1531 = vmatpush1.bf16.msra.mxu0 0
        %1532 = vmatprep.subr.bf16.mxu0 0
        %1533 = vmatpush1.bf16.msra.mxu0 0
        %1534 = vmatprep.subr.bf16.mxu0 0
        %1535 = vmatpush1.bf16.msra.mxu0 0
        %1536 = vmatprep.subr.bf16.mxu0 0
        %1537 = vmatpush1.bf16.msra.mxu0 0
        %1538 = vmatprep.subr.bf16.mxu0 0
        %1539 = vmatpush1.bf16.msra.mxu0 0
        %1540 = vmatprep.subr.bf16.mxu0 0
        %1541 = vmatpush1.bf16.msra.mxu0 %v1524
        %1542 = vmatprep.subr.bf16.mxu0 0
        %1543 = vmatpush2.bf16.msra.mxu0 0
        %1544 = vmatprep.subr.bf16.mxu0 0
        %1545 = vmatpush2.bf16.msra.mxu0 0
        %1546 = vmatprep.subr.bf16.mxu0 0
        %1547 = vmatpush2.bf16.msra.mxu0 0
        %1548 = vmatprep.subr.bf16.mxu0 0
        %1549 = vmatpush2.bf16.msra.mxu0 0
        %1550 = vmatprep.subr.bf16.mxu0 0
        %1551 = vmatpush2.bf16.msra.mxu0 0
        %1552 = vmatprep.subr.bf16.mxu0 0
        %1553 = vmatpush2.bf16.msra.mxu0 0
        %1554 = vmatprep.subr.bf16.mxu0 0
        %1555 = vmatpush2.bf16.msra.mxu0 0
        %1556 = vmatprep.subr.bf16.mxu0 0
        %1557 = vmatpush2.bf16.msra.mxu0 0
        %1558 = vmatprep.mubr.bf16.mxu0 0
        %1559 = vmatmul.mubr.bf16.gmra.mxu0 %v1521
        %v1560 = vpop.f32.mrf.mxu0
        %v1561 = vadd.f32 0.0, %v1560
        %v1562 = vpop.f32.mrf.mxu0
        %v1563 = vpop.f32.mrf.mxu0
        %v1564 = vpop.f32.mrf.mxu0
        %1565 = vdwg.mxu0
        %v1566 = vld [vmem:[%s408] sm:$0xf]
        %v1567 = vadd.f32 %v1566, %v1561
        %1568 = vst [vmem:[%s408] sm:$0xf] %v1567
        %v1569 = vld [vmem:[#allocation3] sm:$0xff]
        %1570 = vrot.lane.b32.xlu0 %v447, 31
        %v1571 = vpop.permute.xlu0 %1570
        %v1572 = vrot.slane %v1571, 4
        %v1573 = vsel %vm783, %v1572, %v1571
        %v1575 = vmul.f32 %v1569, %v1573
        %v1576 = vld [vmem:[%s5] sm:$0x3]
        %v1578 = vcombine.high %v1575, %v1575
        %v1580 = vpack.c.bf16 %v1575, %v1575
        %v1581 = vpack.c.bf16 %v1578, %v1578
        %v1584 = vunpack.c.l.s4 1983009808
        %v1585 = vunpack.c.0.s8 %v1584
        %v1586 = vlaneseq
        %v1587 = vshrl.u32 %v1586, 7
        %v1588 = vsub.s32 %v1585, %v1587
        %v1589 = vrot.slane %v1576, %v1588
        %1590 = vrot.lane.b32.xlu0 %v1589, 116
        %v1591 = vpop.permute.xlu0 %1590
        %1594 = vrot.lane.b32.xlu0 %v1580, 97
        %v1595 = vpop.permute.xlu0 %1594
        %1596 = vrot.lane.b32.xlu0 %v1581, 97
        %v1597 = vpop.permute.xlu0 %1596
        %v1598 = vsel %vm809, %v1595, %v1597
        %v1600 = vsel %vm533, %v1591, 0
        %v1603 = vsel %vm537, %v1598, 0
        %1605 = vmatprep.subr.bf16.mxu0 0
        %1606 = vmatpush1.bf16.msra.mxu0 0
        %1607 = vmatprep.subr.bf16.mxu0 0
        %1608 = vmatpush1.bf16.msra.mxu0 0
        %1609 = vmatprep.subr.bf16.mxu0 0
        %1610 = vmatpush1.bf16.msra.mxu0 0
        %1611 = vmatprep.subr.bf16.mxu0 0
        %1612 = vmatpush1.bf16.msra.mxu0 0
        %1613 = vmatprep.subr.bf16.mxu0 0
        %1614 = vmatpush1.bf16.msra.mxu0 0
        %1615 = vmatprep.subr.bf16.mxu0 0
        %1616 = vmatpush1.bf16.msra.mxu0 0
        %1617 = vmatprep.subr.bf16.mxu0 0
        %1618 = vmatpush1.bf16.msra.mxu0 0
        %1619 = vmatprep.subr.bf16.mxu0 0
        %1620 = vmatpush1.bf16.msra.mxu0 %v1603
        %1621 = vmatprep.subr.bf16.mxu0 0
        %1622 = vmatpush2.bf16.msra.mxu0 0
        %1623 = vmatprep.subr.bf16.mxu0 0
        %1624 = vmatpush2.bf16.msra.mxu0 0
        %1625 = vmatprep.subr.bf16.mxu0 0
        %1626 = vmatpush2.bf16.msra.mxu0 0
        %1627 = vmatprep.subr.bf16.mxu0 0
        %1628 = vmatpush2.bf16.msra.mxu0 0
        %1629 = vmatprep.subr.bf16.mxu0 0
        %1630 = vmatpush2.bf16.msra.mxu0 0
        %1631 = vmatprep.subr.bf16.mxu0 0
        %1632 = vmatpush2.bf16.msra.mxu0 0
        %1633 = vmatprep.subr.bf16.mxu0 0
        %1634 = vmatpush2.bf16.msra.mxu0 0
        %1635 = vmatprep.subr.bf16.mxu0 0
        %1636 = vmatpush2.bf16.msra.mxu0 0
        %1637 = vmatprep.mubr.bf16.mxu0 0
        %1638 = vmatmul.mubr.bf16.gmra.mxu0 %v1600
        %v1639 = vpop.f32.mrf.mxu0
        %v1640 = vadd.f32 0.0, %v1639
        %v1641 = vpop.f32.mrf.mxu0
        %v1642 = vpop.f32.mrf.mxu0
        %v1643 = vpop.f32.mrf.mxu0
        %1644 = vdwg.mxu0
        %v1645 = vld [vmem:[%s408] sm:$0xf]
        %v1646 = vadd.f32 %v1645, %v1640
        %1647 = vst [vmem:[%s408] sm:$0xf] %v1646
        %v1648 = vld [vmem:[#allocation3] sm:$0xff]
        %v1649 = vld [vmem:[%s5] sm:$0x3]
        %v1651 = vcombine.high %v1648, %v1648
        %v1653 = vpack.c.bf16 %v1648, %v1648
        %v1654 = vpack.c.bf16 %v1651, %v1651
        %v1657 = vunpack.c.l.s4 1983009808
        %v1658 = vunpack.c.0.s8 %v1657
        %v1659 = vlaneseq
        %v1660 = vshrl.u32 %v1659, 7
        %v1661 = vsub.s32 %v1658, %v1660
        %v1662 = vrot.slane %v1649, %v1661
        %1663 = vrot.lane.b32.xlu0 %v1662, 112
        %v1664 = vpop.permute.xlu0 %1663
        %1667 = vrot.lane.b32.xlu0 %v1653, 96
        %v1668 = vpop.permute.xlu0 %1667
        %1669 = vrot.lane.b32.xlu0 %v1654, 96
        %v1670 = vpop.permute.xlu0 %1669
        %v1671 = vsel %vm895, %v1668, %v1670
        %v1673 = vsel %vm533, %v1664, 0
        %v1676 = vsel %vm537, %v1671, 0
        %1678 = vmatprep.subr.bf16.mxu0 0
        %1679 = vmatpush1.bf16.msra.mxu0 0
        %1680 = vmatprep.subr.bf16.mxu0 0
        %1681 = vmatpush1.bf16.msra.mxu0 0
        %1682 = vmatprep.subr.bf16.mxu0 0
        %1683 = vmatpush1.bf16.msra.mxu0 0
        %1684 = vmatprep.subr.bf16.mxu0 0
        %1685 = vmatpush1.bf16.msra.mxu0 0
        %1686 = vmatprep.subr.bf16.mxu0 0
        %1687 = vmatpush1.bf16.msra.mxu0 0
        %1688 = vmatprep.subr.bf16.mxu0 0
        %1689 = vmatpush1.bf16.msra.mxu0 0
        %1690 = vmatprep.subr.bf16.mxu0 0
        %1691 = vmatpush1.bf16.msra.mxu0 0
        %1692 = vmatprep.subr.bf16.mxu0 0
        %1693 = vmatpush1.bf16.msra.mxu0 %v1676
        %1694 = vmatprep.subr.bf16.mxu0 0
        %1695 = vmatpush2.bf16.msra.mxu0 0
        %1696 = vmatprep.subr.bf16.mxu0 0
        %1697 = vmatpush2.bf16.msra.mxu0 0
        %1698 = vmatprep.subr.bf16.mxu0 0
        %1699 = vmatpush2.bf16.msra.mxu0 0
        %1700 = vmatprep.subr.bf16.mxu0 0
        %1701 = vmatpush2.bf16.msra.mxu0 0
        %1702 = vmatprep.subr.bf16.mxu0 0
        %1703 = vmatpush2.bf16.msra.mxu0 0
        %1704 = vmatprep.subr.bf16.mxu0 0
        %1705 = vmatpush2.bf16.msra.mxu0 0
        %1706 = vmatprep.subr.bf16.mxu0 0
        %1707 = vmatpush2.bf16.msra.mxu0 0
        %1708 = vmatprep.subr.bf16.mxu0 0
        %1709 = vmatpush2.bf16.msra.mxu0 0
        %1710 = vmatprep.mubr.bf16.mxu0 0
        %1711 = vmatmul.mubr.bf16.gmra.mxu0 %v1673
        %v1712 = vpop.f32.mrf.mxu0
        %v1713 = vadd.f32 0.0, %v1712
        %v1714 = vpop.f32.mrf.mxu0
        %v1715 = vpop.f32.mrf.mxu0
        %v1716 = vpop.f32.mrf.mxu0
        %1717 = vdwg.mxu0
        %v1718 = vld [vmem:[%s408] sm:$0xf]
        %v1719 = vadd.f32 %v1718, %v1713
        %1720 = vst [vmem:[%s408] sm:$0xf] %v1719
        %v1721 = vld [vmem:[#allocation3] sm:$0xff]
        %1722 = vrot.lane.b32.xlu0 %v453, 33
        %v1723 = vpop.permute.xlu0 %1722
        %v1724 = vrot.slane %v1723, 4
        %v1725 = vsel %vm962, %v1724, %v1723
        %v1727 = vmul.f32 %v1721, %v1725
        %v1728 = vld [vmem:[%s5] sm:$0x3]
        %v1730 = vcombine.high %v1727, %v1727
        %v1732 = vpack.c.bf16 %v1727, %v1727
        %v1733 = vpack.c.bf16 %v1730, %v1730
        %v1736 = vunpack.c.l.s4 1983009808
        %v1737 = vunpack.c.0.s8 %v1736
        %v1738 = vlaneseq
        %v1739 = vshrl.u32 %v1738, 7
        %v1740 = vsub.s32 %v1737, %v1739
        %v1741 = vrot.slane %v1728, %v1740
        %1742 = vrot.lane.b32.xlu0 %v1741, 108
        %v1743 = vpop.permute.xlu0 %1742
        %1746 = vrot.lane.b32.xlu0 %v1732, 95
        %v1747 = vpop.permute.xlu0 %1746
        %1748 = vrot.lane.b32.xlu0 %v1733, 95
        %v1749 = vpop.permute.xlu0 %1748
        %v1750 = vsel %vm988, %v1747, %v1749
        %v1752 = vsel %vm533, %v1743, 0
        %v1755 = vsel %vm537, %v1750, 0
        %1757 = vmatprep.subr.bf16.mxu0 0
        %1758 = vmatpush1.bf16.msra.mxu0 0
        %1759 = vmatprep.subr.bf16.mxu0 0
        %1760 = vmatpush1.bf16.msra.mxu0 0
        %1761 = vmatprep.subr.bf16.mxu0 0
        %1762 = vmatpush1.bf16.msra.mxu0 0
        %1763 = vmatprep.subr.bf16.mxu0 0
        %1764 = vmatpush1.bf16.msra.mxu0 0
        %1765 = vmatprep.subr.bf16.mxu0 0
        %1766 = vmatpush1.bf16.msra.mxu0 0
        %1767 = vmatprep.subr.bf16.mxu0 0
        %1768 = vmatpush1.bf16.msra.mxu0 0
        %1769 = vmatprep.subr.bf16.mxu0 0
        %1770 = vmatpush1.bf16.msra.mxu0 0
        %1771 = vmatprep.subr.bf16.mxu0 0
        %1772 = vmatpush1.bf16.msra.mxu0 %v1755
        %1773 = vmatprep.subr.bf16.mxu0 0
        %1774 = vmatpush2.bf16.msra.mxu0 0
        %1775 = vmatprep.subr.bf16.mxu0 0
        %1776 = vmatpush2.bf16.msra.mxu0 0
        %1777 = vmatprep.subr.bf16.mxu0 0
        %1778 = vmatpush2.bf16.msra.mxu0 0
        %1779 = vmatprep.subr.bf16.mxu0 0
        %1780 = vmatpush2.bf16.msra.mxu0 0
        %1781 = vmatprep.subr.bf16.mxu0 0
        %1782 = vmatpush2.bf16.msra.mxu0 0
        %1783 = vmatprep.subr.bf16.mxu0 0
        %1784 = vmatpush2.bf16.msra.mxu0 0
        %1785 = vmatprep.subr.bf16.mxu0 0
        %1786 = vmatpush2.bf16.msra.mxu0 0
        %1787 = vmatprep.subr.bf16.mxu0 0
        %1788 = vmatpush2.bf16.msra.mxu0 0
        %1789 = vmatprep.mubr.bf16.mxu0 0
        %1790 = vmatmul.mubr.bf16.gmra.mxu0 %v1752
        %v1791 = vpop.f32.mrf.mxu0
        %v1792 = vadd.f32 0.0, %v1791
        %v1793 = vpop.f32.mrf.mxu0
        %v1794 = vpop.f32.mrf.mxu0
        %v1795 = vpop.f32.mrf.mxu0
        %1796 = vdwg.mxu0
        %v1797 = vld [vmem:[%s408] sm:$0xf]
        %v1798 = vadd.f32 %v1797, %v1792
        %1799 = vst [vmem:[%s408] sm:$0xf] %v1798
        %v1800 = vld [vmem:[#allocation3] sm:$0xff]
        %1801 = vrot.lane.b32.xlu0 %v447, 47
        %v1802 = vpop.permute.xlu0 %1801
        %v1803 = vrot.slane %v1802, 4
        %v1804 = vsel %vm1055, %v1803, %v1802
        %v1806 = vmul.f32 %v1800, %v1804
        %v1807 = vld [vmem:[%s5] sm:$0x3]
        %v1809 = vcombine.high %v1806, %v1806
        %v1811 = vpack.c.bf16 %v1806, %v1806
        %v1812 = vpack.c.bf16 %v1809, %v1809
        %v1815 = vunpack.c.l.s4 1983009808
        %v1816 = vunpack.c.0.s8 %v1815
        %v1817 = vlaneseq
        %v1818 = vshrl.u32 %v1817, 7
        %v1819 = vsub.s32 %v1816, %v1818
        %v1820 = vrot.slane %v1807, %v1819
        %1821 = vrot.lane.b32.xlu0 %v1820, 104
        %v1822 = vpop.permute.xlu0 %1821
        %1825 = vrot.lane.b32.xlu0 %v1811, 81
        %v1826 = vpop.permute.xlu0 %1825
        %1827 = vrot.lane.b32.xlu0 %v1812, 81
        %v1828 = vpop.permute.xlu0 %1827
        %v1829 = vsel %vm1081, %v1826, %v1828
        %v1831 = vsel %vm533, %v1822, 0
        %v1834 = vsel %vm537, %v1829, 0
        %1836 = vmatprep.subr.bf16.mxu0 0
        %1837 = vmatpush1.bf16.msra.mxu0 0
        %1838 = vmatprep.subr.bf16.mxu0 0
        %1839 = vmatpush1.bf16.msra.mxu0 0
        %1840 = vmatprep.subr.bf16.mxu0 0
        %1841 = vmatpush1.bf16.msra.mxu0 0
        %1842 = vmatprep.subr.bf16.mxu0 0
        %1843 = vmatpush1.bf16.msra.mxu0 0
        %1844 = vmatprep.subr.bf16.mxu0 0
        %1845 = vmatpush1.bf16.msra.mxu0 0
        %1846 = vmatprep.subr.bf16.mxu0 0
        %1847 = vmatpush1.bf16.msra.mxu0 0
        %1848 = vmatprep.subr.bf16.mxu0 0
        %1849 = vmatpush1.bf16.msra.mxu0 0
        %1850 = vmatprep.subr.bf16.mxu0 0
        %1851 = vmatpush1.bf16.msra.mxu0 %v1834
        %1852 = vmatprep.subr.bf16.mxu0 0
        %1853 = vmatpush2.bf16.msra.mxu0 0
        %1854 = vmatprep.subr.bf16.mxu0 0
        %1855 = vmatpush2.bf16.msra.mxu0 0
        %1856 = vmatprep.subr.bf16.mxu0 0
        %1857 = vmatpush2.bf16.msra.mxu0 0
        %1858 = vmatprep.subr.bf16.mxu0 0
        %1859 = vmatpush2.bf16.msra.mxu0 0
        %1860 = vmatprep.subr.bf16.mxu0 0
        %1861 = vmatpush2.bf16.msra.mxu0 0
        %1862 = vmatprep.subr.bf16.mxu0 0
        %1863 = vmatpush2.bf16.msra.mxu0 0
        %1864 = vmatprep.subr.bf16.mxu0 0
        %1865 = vmatpush2.bf16.msra.mxu0 0
        %1866 = vmatprep.subr.bf16.mxu0 0
        %1867 = vmatpush2.bf16.msra.mxu0 0
        %1868 = vmatprep.mubr.bf16.mxu0 0
        %1869 = vmatmul.mubr.bf16.gmra.mxu0 %v1831
        %v1870 = vpop.f32.mrf.mxu0
        %v1871 = vadd.f32 0.0, %v1870
        %v1872 = vpop.f32.mrf.mxu0
        %v1873 = vpop.f32.mrf.mxu0
        %v1874 = vpop.f32.mrf.mxu0
        %1875 = vdwg.mxu0
        %v1876 = vld [vmem:[%s408] sm:$0xf]
        %v1877 = vadd.f32 %v1876, %v1871
        %1878 = vst [vmem:[%s408] sm:$0xf] %v1877
        %v1879 = vld [vmem:[#allocation3] sm:$0xff]
        %v1880 = vld [vmem:[%s5] sm:$0x3]
        %v1882 = vcombine.high %v1879, %v1879
        %v1884 = vpack.c.bf16 %v1879, %v1879
        %v1885 = vpack.c.bf16 %v1882, %v1882
        %v1888 = vunpack.c.l.s4 1983009808
        %v1889 = vunpack.c.0.s8 %v1888
        %v1890 = vlaneseq
        %v1891 = vshrl.u32 %v1890, 7
        %v1892 = vsub.s32 %v1889, %v1891
        %v1893 = vrot.slane %v1880, %v1892
        %1894 = vrot.lane.b32.xlu0 %v1893, 100
        %v1895 = vpop.permute.xlu0 %1894
        %1898 = vrot.lane.b32.xlu0 %v1884, 80
        %v1899 = vpop.permute.xlu0 %1898
        %1900 = vrot.lane.b32.xlu0 %v1885, 80
        %v1901 = vpop.permute.xlu0 %1900
        %v1902 = vsel %vm1167, %v1899, %v1901
        %v1904 = vsel %vm533, %v1895, 0
        %v1907 = vsel %vm537, %v1902, 0
        %1909 = vmatprep.subr.bf16.mxu0 0
        %1910 = vmatpush1.bf16.msra.mxu0 0
        %1911 = vmatprep.subr.bf16.mxu0 0
        %1912 = vmatpush1.bf16.msra.mxu0 0
        %1913 = vmatprep.subr.bf16.mxu0 0
        %1914 = vmatpush1.bf16.msra.mxu0 0
        %1915 = vmatprep.subr.bf16.mxu0 0
        %1916 = vmatpush1.bf16.msra.mxu0 0
        %1917 = vmatprep.subr.bf16.mxu0 0
        %1918 = vmatpush1.bf16.msra.mxu0 0
        %1919 = vmatprep.subr.bf16.mxu0 0
        %1920 = vmatpush1.bf16.msra.mxu0 0
        %1921 = vmatprep.subr.bf16.mxu0 0
        %1922 = vmatpush1.bf16.msra.mxu0 0
        %1923 = vmatprep.subr.bf16.mxu0 0
        %1924 = vmatpush1.bf16.msra.mxu0 %v1907
        %1925 = vmatprep.subr.bf16.mxu0 0
        %1926 = vmatpush2.bf16.msra.mxu0 0
        %1927 = vmatprep.subr.bf16.mxu0 0
        %1928 = vmatpush2.bf16.msra.mxu0 0
        %1929 = vmatprep.subr.bf16.mxu0 0
        %1930 = vmatpush2.bf16.msra.mxu0 0
        %1931 = vmatprep.subr.bf16.mxu0 0
        %1932 = vmatpush2.bf16.msra.mxu0 0
        %1933 = vmatprep.subr.bf16.mxu0 0
        %1934 = vmatpush2.bf16.msra.mxu0 0
        %1935 = vmatprep.subr.bf16.mxu0 0
        %1936 = vmatpush2.bf16.msra.mxu0 0
        %1937 = vmatprep.subr.bf16.mxu0 0
        %1938 = vmatpush2.bf16.msra.mxu0 0
        %1939 = vmatprep.subr.bf16.mxu0 0
        %1940 = vmatpush2.bf16.msra.mxu0 0
        %1941 = vmatprep.mubr.bf16.mxu0 0
        %1942 = vmatmul.mubr.bf16.gmra.mxu0 %v1904
        %v1943 = vpop.f32.mrf.mxu0
        %v1944 = vadd.f32 0.0, %v1943
        %v1945 = vpop.f32.mrf.mxu0
        %v1946 = vpop.f32.mrf.mxu0
        %v1947 = vpop.f32.mrf.mxu0
        %1948 = vdwg.mxu0
        %v1949 = vld [vmem:[%s408] sm:$0xf]
        %v1950 = vadd.f32 %v1949, %v1944
        %1951 = vst [vmem:[%s408] sm:$0xf] %v1950
        %v1952 = vld [vmem:[#allocation3] sm:$0xff]
        %1953 = vrot.lane.b32.xlu0 %v453, 49
        %v1954 = vpop.permute.xlu0 %1953
        %v1955 = vrot.slane %v1954, 4
        %v1956 = vsel %vm1234, %v1955, %v1954
        %v1958 = vmul.f32 %v1952, %v1956
        %v1959 = vld [vmem:[%s5] sm:$0x3]
        %v1961 = vcombine.high %v1958, %v1958
        %v1963 = vpack.c.bf16 %v1958, %v1958
        %v1964 = vpack.c.bf16 %v1961, %v1961
        %v1967 = vunpack.c.l.s4 1983009808
        %v1968 = vunpack.c.0.s8 %v1967
        %v1969 = vlaneseq
        %v1970 = vshrl.u32 %v1969, 7
        %v1971 = vsub.s32 %v1968, %v1970
        %v1972 = vrot.slane %v1959, %v1971
        %1973 = vrot.lane.b32.xlu0 %v1972, 96
        %v1974 = vpop.permute.xlu0 %1973
        %1977 = vrot.lane.b32.xlu0 %v1963, 79
        %v1978 = vpop.permute.xlu0 %1977
        %1979 = vrot.lane.b32.xlu0 %v1964, 79
        %v1980 = vpop.permute.xlu0 %1979
        %v1981 = vsel %vm1260, %v1978, %v1980
        %v1983 = vsel %vm533, %v1974, 0
        %v1986 = vsel %vm537, %v1981, 0
        %1988 = vmatprep.subr.bf16.mxu0 0
        %1989 = vmatpush1.bf16.msra.mxu0 0
        %1990 = vmatprep.subr.bf16.mxu0 0
        %1991 = vmatpush1.bf16.msra.mxu0 0
        %1992 = vmatprep.subr.bf16.mxu0 0
        %1993 = vmatpush1.bf16.msra.mxu0 0
        %1994 = vmatprep.subr.bf16.mxu0 0
        %1995 = vmatpush1.bf16.msra.mxu0 0
        %1996 = vmatprep.subr.bf16.mxu0 0
        %1997 = vmatpush1.bf16.msra.mxu0 0
        %1998 = vmatprep.subr.bf16.mxu0 0
        %1999 = vmatpush1.bf16.msra.mxu0 0
        %2000 = vmatprep.subr.bf16.mxu0 0
        %2001 = vmatpush1.bf16.msra.mxu0 0
        %2002 = vmatprep.subr.bf16.mxu0 0
        %2003 = vmatpush1.bf16.msra.mxu0 %v1986
        %2004 = vmatprep.subr.bf16.mxu0 0
        %2005 = vmatpush2.bf16.msra.mxu0 0
        %2006 = vmatprep.subr.bf16.mxu0 0
        %2007 = vmatpush2.bf16.msra.mxu0 0
        %2008 = vmatprep.subr.bf16.mxu0 0
        %2009 = vmatpush2.bf16.msra.mxu0 0
        %2010 = vmatprep.subr.bf16.mxu0 0
        %2011 = vmatpush2.bf16.msra.mxu0 0
        %2012 = vmatprep.subr.bf16.mxu0 0
        %2013 = vmatpush2.bf16.msra.mxu0 0
        %2014 = vmatprep.subr.bf16.mxu0 0
        %2015 = vmatpush2.bf16.msra.mxu0 0
        %2016 = vmatprep.subr.bf16.mxu0 0
        %2017 = vmatpush2.bf16.msra.mxu0 0
        %2018 = vmatprep.subr.bf16.mxu0 0
        %2019 = vmatpush2.bf16.msra.mxu0 0
        %2020 = vmatprep.mubr.bf16.mxu0 0
        %2021 = vmatmul.mubr.bf16.gmra.mxu0 %v1983
        %v2022 = vpop.f32.mrf.mxu0
        %v2023 = vadd.f32 0.0, %v2022
        %v2024 = vpop.f32.mrf.mxu0
        %v2025 = vpop.f32.mrf.mxu0
        %v2026 = vpop.f32.mrf.mxu0
        %2027 = vdwg.mxu0
        %v2028 = vld [vmem:[%s408] sm:$0xf]
        %v2029 = vadd.f32 %v2028, %v2023
        %2030 = vst [vmem:[%s408] sm:$0xf] %v2029
        %v2031 = vld [vmem:[%s408] sm:$0xf]
        %v2032 = vld [vmem:[%s6] sm:$0xf]
        %2034 = vset.pattern.permute.xlu0 0
        %2035 = vperm.xlu0 %2034, %v2032
        %v2036 = vpop.permute.xlu0 %2035
        %v2038 = vadd.f32 %v2031, %v2036
        %v2039 = vld [vmem:[%s350] sm:$0xf]
        %v2040 = vadd.f32 %v2038, %v2039
        %2041 = vst [vmem:[%s408] sm:$0xf] %v2040
        %s2042 = sand.u32 %s229, 1
        %s2043 = scalar_lea.sflag [#allocation6], %s2042
        %s2044 = sand.u32 %s229, 1
        %s2045 = smul.addr %s2044, 4
        %s2046 = scalar_lea.vmem [#allocation10], %s2045
        // Predicated region
        $region85: #{tpu_custom_call.1} parent=47 // pred_check
          %p2047 = pneg %p239
        $region86: #{tpu_custom_call.1} parent=47 // pred_check_branch
          %2049 = sbr.rel (%p2047) target = $region88
        $region87: #{tpu_custom_call.1} parent=47 // pred_region
          %s2051 = ssub.s32 64, 64
          %2052 = vsyncadd %s2043, %s2051
          %s2053 = smul.addr %s31, 2
          %s2054 = sadd.s32 %s32, %s2053
          %s2055 = smul.addr %s2054, 64
          %s2056 = scalar_lea.hbm %s7, %s2055
          %s2058 = sshll.u32 %s2046, 4
          %s2059 = int_to_ptr.vmem [resolvable:$true] %s2058
          %2061 = dma.vmem_to_hbm [thread:$0]  %s2059, 64, %s2056, %s2043
        $region88: #{tpu_custom_call.1} parent=47 // pred_fallthru
          _
      $region48: #{tpu_custom_call.1} parent=5 // pred_fallthru
        _
      %p2062 = scmp.le.s32.totalorder 2, %s22
      // Predicated region
      $region89: #{tpu_custom_call.1} parent=5 // pred_check
        %p2063 = pneg %p2062
      $region90: #{tpu_custom_call.1} parent=5 // pred_check_branch
        %2065 = sbr.rel (%p2063) target = $region92
      $region91: #{tpu_custom_call.1} parent=5 // pred_region
        %s2066 = ssub.s32 %s22, 2
        // Predicated region
        $region93: #{tpu_custom_call.1} parent=91 // pred_check
          %p2067 = pneg %p245
        $region94: #{tpu_custom_call.1} parent=91 // pred_check_branch
          %2069 = sbr.rel (%p2067) target = $region96
        $region95: #{tpu_custom_call.1} parent=91 // pred_region
          %s2070 = sand.u32 %s230, 1
          %s2071 = scalar_lea.sflag [#allocation6], %s2070
          %s2072 = sand.u32 %s230, 1
          %s2073 = smul.addr %s2072, 4
          %s2074 = scalar_lea.vmem [#allocation10], %s2073
          %2075 = dma.done %s2071, 64
        $region96: #{tpu_custom_call.1} parent=91 // pred_fallthru
          _
      $region92: #{tpu_custom_call.1} parent=5 // pred_fallthru
        _
    $region6: #{tpu_custom_call.1} parent=1 // loop_footer
      %s26 = sadd.s32 1, %s22
    $region7: #{tpu_custom_call.1} parent=1 // loop_footer_branch
      %21 = sbr.rel target = $region3
    $region8: #{tpu_custom_call.1} parent=1 // loop_exit
      _
    %2076 = vsyncpa [#allocation5], 1
    %s2077 = scalar_lea.sflag [#allocation5], 1
    %2078 = vsyncpa %s2077, 1
    %2079 = vsyncpa [#allocation8], 1
    %s2080 = scalar_lea.sflag [#allocation8], 1
    %2081 = vsyncpa %s2080, 1
    %2082 = vsyncpa [#allocation6], 1
    %s2083 = scalar_lea.sflag [#allocation6], 1
    %2084 = vsyncpa %s2083, 1

</llo_original>
